<compile_context>
chip_gen: v6e
topology: v6e:2x2x1
jax: 0.10.0
libtpu: 0.0.40
codegen_flags: <defaults>
</compile_context>

<pallas_src>
import functools

import jax
import jax.numpy as jnp
import numpy as np
from jax.experimental import pallas as pl
from jax.experimental.pallas import tpu as pltpu


# ------------------------------ helpers -------------------------------------


def _round_up(n, m):
    return ((n + m - 1) // m) * m


def _choose_tm(M, target=512):
    """Largest row tile <= target that divides M (M is always a multiple of 8)."""
    if M <= target:
        return M
    for tm in range(target, 7, -8):
        if M % tm == 0:
            return tm
    return M


# ----------------------------- Pallas kernels -------------------------------


def _fc1_proj_kernel(x_ref, w1_ref, b1_ref, wih_ref, bih_ref, o_ref):
    """gi1 = (x @ W1 + b1) @ W_ih1 + b_ih1  for a tile of rows (all timesteps)."""
    h = jnp.dot(x_ref[...].astype(jnp.bfloat16), w1_ref[...],
                preferred_element_type=jnp.float32) + b1_ref[...]
    gi = jnp.dot(h.astype(jnp.bfloat16), wih_ref[...],
                 preferred_element_type=jnp.float32) + bih_ref[...]
    o_ref[...] = gi


def _gru2_kernel(gi1_ref, whh1_ref, bhh1_ref, wih2_ref, bih2_ref,
                 whh2_ref, bhh2_ref, o_ref, h1_ref, h2_ref, *, Hp):
    """Fused 2-layer GRU, one timestep per grid step (PyTorch gate order r,z,n).

    gi1_ref:  (1, TB, 3Hp) precomputed layer-1 input gates for this step (f32)
    w*_ref:   (Hp, 3Hp) gate-concatenated, pre-transposed weights (bf16, resident)
    b*_ref:   (1, 3Hp) biases (f32)
    o_ref:    (1, TB, Hp) layer-2 hidden state output for this step (bf16)
    h1_ref/h2_ref: (TB, Hp) VMEM scratch hidden states carried across steps (f32)
    """
    t = pl.program_id(1)

    @pl.when(t == 0)
    def _():
        h1_ref[...] = jnp.zeros_like(h1_ref)   # PyTorch default h0 = 0
        h2_ref[...] = jnp.zeros_like(h2_ref)

    h1 = h1_ref[...]
    h2 = h2_ref[...]

    # ----- layer 1 (input projection hoisted outside the recurrence) -----
    gi1 = gi1_ref[0]
    gh1 = jnp.dot(h1.astype(jnp.bfloat16), whh1_ref[...],
                  preferred_element_type=jnp.float32) + bhh1_ref[...]
    # gh2 only depends on h2 (available now); independent of the layer-1 chain,
    # so the scheduler can overlap its MXU push with the layer-1 gate math.
    gh2 = jnp.dot(h2.astype(jnp.bfloat16), whh2_ref[...],
                  preferred_element_type=jnp.float32) + bhh2_ref[...]

    r1 = jax.nn.sigmoid(gi1[:, :Hp] + gh1[:, :Hp])
    z1 = jax.nn.sigmoid(gi1[:, Hp:2 * Hp] + gh1[:, Hp:2 * Hp])
    n1 = jnp.tanh(gi1[:, 2 * Hp:] + r1 * gh1[:, 2 * Hp:])
    h1n = (1.0 - z1) * n1 + z1 * h1

    # ----- layer 2 -----
    gi2 = jnp.dot(h1n.astype(jnp.bfloat16), wih2_ref[...],
                  preferred_element_type=jnp.float32) + bih2_ref[...]
    r2 = jax.nn.sigmoid(gi2[:, :Hp] + gh2[:, :Hp])
    z2 = jax.nn.sigmoid(gi2[:, Hp:2 * Hp] + gh2[:, Hp:2 * Hp])
    n2 = jnp.tanh(gi2[:, 2 * Hp:] + r2 * gh2[:, 2 * Hp:])
    h2n = (1.0 - z2) * n2 + z2 * h2

    h1_ref[...] = h1n
    h2_ref[...] = h2n
    o_ref[0] = h2n.astype(o_ref.dtype)   # bf16 writeback (MLP casts to bf16 anyway)


def _mlp_kernel(x_ref, w2_ref, b2_ref, w3_ref, b3_ref, w4_ref, b4_ref, o_ref):
    """sigmoid(relu(relu(x@W2+b2)@W3+b3)@W4+b4) on a tile of rows."""
    h = jnp.dot(x_ref[...].astype(jnp.bfloat16), w2_ref[...],
                preferred_element_type=jnp.float32) + b2_ref[...]
    h = jnp.maximum(h, 0.0)
    h = jnp.dot(h.astype(jnp.bfloat16), w3_ref[...],
                preferred_element_type=jnp.float32) + b3_ref[...]
    h = jnp.maximum(h, 0.0)
    # TODO(synk): nn.Dropout(0.2) is treated as inference-mode identity (no RNG mask).
    y = jnp.dot(h.astype(jnp.bfloat16), w4_ref[...],
                preferred_element_type=jnp.float32) + b4_ref[...]
    o_ref[...] = jax.nn.sigmoid(y)


# ------------------------- pallas_call wrappers ------------------------------


def fc1_ih_proj(x2d, p, TM):
    M, Dp = x2d.shape
    Hp = p["fc1_w_t"].shape[1]
    return pl.pallas_call(
        _fc1_proj_kernel,
        out_shape=jax.ShapeDtypeStruct((M, 3 * Hp), jnp.float32),
        grid_spec=pltpu.PrefetchScalarGridSpec(
            num_scalar_prefetch=0,
            grid=(M // TM,),
            in_specs=[
                pl.BlockSpec((TM, Dp), lambda i: (i, 0)),
                pl.BlockSpec((Dp, Hp), lambda i: (0, 0)),
                pl.BlockSpec((1, Hp), lambda i: (0, 0)),
                pl.BlockSpec((Hp, 3 * Hp), lambda i: (0, 0)),
                pl.BlockSpec((1, 3 * Hp), lambda i: (0, 0)),
            ],
            out_specs=pl.BlockSpec((TM, 3 * Hp), lambda i: (i, 0)),
        ),
        compiler_params=pltpu.CompilerParams(dimension_semantics=("parallel",)),
    )(x2d, p["fc1_w_t"], p["fc1_b"], p["gru1_wih_t"], p["gru1_bih"])


def fused_gru2(gi1, p):
    S, B_pad, threeHp = gi1.shape
    Hp = threeHp // 3
    # Batch-block the recurrence so megacore/2-TC parts can each take half the batch.
    TB = B_pad // 2 if B_pad % 16 == 0 else B_pad
    kernel = functools.partial(_gru2_kernel, Hp=Hp)
    return pl.pallas_call(
        kernel,
        out_shape=jax.ShapeDtypeStruct((S, B_pad, Hp), jnp.bfloat16),
        grid_spec=pltpu.PrefetchScalarGridSpec(
            num_scalar_prefetch=0,
            grid=(B_pad // TB, S),
            in_specs=[
                pl.BlockSpec((1, TB, 3 * Hp), lambda bb, t: (t, bb, 0)),
                pl.BlockSpec((Hp, 3 * Hp), lambda bb, t: (0, 0)),
                pl.BlockSpec((1, 3 * Hp), lambda bb, t: (0, 0)),
                pl.BlockSpec((Hp, 3 * Hp), lambda bb, t: (0, 0)),
                pl.BlockSpec((1, 3 * Hp), lambda bb, t: (0, 0)),
                pl.BlockSpec((Hp, 3 * Hp), lambda bb, t: (0, 0)),
                pl.BlockSpec((1, 3 * Hp), lambda bb, t: (0, 0)),
            ],
            out_specs=pl.BlockSpec((1, TB, Hp), lambda bb, t: (t, bb, 0)),
            scratch_shapes=[pltpu.VMEM((TB, Hp), jnp.float32),
                            pltpu.VMEM((TB, Hp), jnp.float32)],
        ),
        compiler_params=pltpu.CompilerParams(
            dimension_semantics=("parallel", "arbitrary")),
    )(gi1, p["gru1_whh_t"], p["gru1_bhh"], p["gru2_wih_t"], p["gru2_bih"],
      p["gru2_whh_t"], p["gru2_bhh"])


def mlp_tail(h2d, p, TM):
    M, Hp = h2d.shape
    Op = p["fc4_w_t"].shape[1]
    return pl.pallas_call(
        _mlp_kernel,
        out_shape=jax.ShapeDtypeStruct((M, Op), jnp.float32),
        grid_spec=pltpu.PrefetchScalarGridSpec(
            num_scalar_prefetch=0,
            grid=(M // TM,),
            in_specs=[
                pl.BlockSpec((TM, Hp), lambda i: (i, 0)),
                pl.BlockSpec((Hp, Hp), lambda i: (0, 0)),
                pl.BlockSpec((1, Hp), lambda i: (0, 0)),
                pl.BlockSpec((Hp, Hp), lambda i: (0, 0)),
                pl.BlockSpec((1, Hp), lambda i: (0, 0)),
                pl.BlockSpec((Hp, Op), lambda i: (0, 0)),
                pl.BlockSpec((1, Op), lambda i: (0, 0)),
            ],
            out_specs=pl.BlockSpec((TM, Op), lambda i: (i, 0)),
        ),
        compiler_params=pltpu.CompilerParams(dimension_semantics=("parallel",)),
    )(h2d, p["fc2_w_t"], p["fc2_b"], p["fc3_w_t"], p["fc3_b"],
      p["fc4_w_t"], p["fc4_b"])


# ----------------------------- parameter prep --------------------------------


def init_params(key, input_dim, hidden_dim, output_dim):
    """Deterministic PyTorch-like uniform(-1/sqrt(fan_in), +1/sqrt(fan_in)) init."""
    params = {}
    keys = iter(jax.random.split(key, 32))

    def unif(shape, fan_in):
        bound = 1.0 / np.sqrt(fan_in)
        return jax.random.uniform(
            next(keys), shape, jnp.float32, minval=-bound, maxval=bound
        )

    params["fc1_w"] = unif((hidden_dim, input_dim), input_dim)
    params["fc1_b"] = unif((hidden_dim,), input_dim)
    for name in ("gru1", "gru2"):
        params[f"{name}_wih"] = unif((3 * hidden_dim, hidden_dim), hidden_dim)
        params[f"{name}_whh"] = unif((3 * hidden_dim, hidden_dim), hidden_dim)
        params[f"{name}_bih"] = unif((3 * hidden_dim,), hidden_dim)
        params[f"{name}_bhh"] = unif((3 * hidden_dim,), hidden_dim)
    params["fc2_w"] = unif((hidden_dim, hidden_dim), hidden_dim)
    params["fc2_b"] = unif((hidden_dim,), hidden_dim)
    params["fc3_w"] = unif((hidden_dim, hidden_dim), hidden_dim)
    params["fc3_b"] = unif((hidden_dim,), hidden_dim)
    params["fc4_w"] = unif((output_dim, hidden_dim), hidden_dim)
    params["fc4_b"] = unif((output_dim,), hidden_dim)
    return params


def prepare_params(params, input_dim, hidden_dim, output_dim):
    """One-time weight prep: transpose, gate-concat, zero-pad to (8,128) multiples,
    bf16-cast matmul operands. Zero padding keeps the math exact."""
    D, H, O = input_dim, hidden_dim, output_dim
    Dp, Hp, Op = _round_up(D, 128), _round_up(H, 128), _round_up(O, 128)

    def pad_linear(w, b, k, kp, n, npad):
        wt = jnp.zeros((kp, npad), jnp.float32).at[:k, :n].set(w.T)
        bb = jnp.zeros((1, npad), jnp.float32).at[0, :n].set(b)
        return wt.astype(jnp.bfloat16), bb

    def pad_gru_w(w):  # PyTorch layout (3H, H), gates stacked [r; z; n]
        w3 = w.reshape(3, H, H)
        out = jnp.zeros((Hp, 3 * Hp), jnp.float32)
        for g in range(3):
            out = out.at[:H, g * Hp:g * Hp + H].set(w3[g].T)
        return out.astype(jnp.bfloat16)

    def pad_gru_b(b):
        b3 = b.reshape(3, H)
        out = jnp.zeros((1, 3 * Hp), jnp.float32)
        for g in range(3):
            out = out.at[0, g * Hp:g * Hp + H].set(b3[g])
        return out

    prep = {}
    prep["fc1_w_t"], prep["fc1_b"] = pad_linear(params["fc1_w"], params["fc1_b"],
                                                D, Dp, H, Hp)
    for name in ("gru1", "gru2"):
        prep[f"{name}_wih_t"] = pad_gru_w(params[f"{name}_wih"])
        prep[f"{name}_whh_t"] = pad_gru_w(params[f"{name}_whh"])
        prep[f"{name}_bih"] = pad_gru_b(params[f"{name}_bih"])
        prep[f"{name}_bhh"] = pad_gru_b(params[f"{name}_bhh"])
    prep["fc2_w_t"], prep["fc2_b"] = pad_linear(params["fc2_w"], params["fc2_b"],
                                                H, Hp, H, Hp)
    prep["fc3_w_t"], prep["fc3_b"] = pad_linear(params["fc3_w"], params["fc3_b"],
                                                H, Hp, H, Hp)
    prep["fc4_w_t"], prep["fc4_b"] = pad_linear(params["fc4_w"], params["fc4_b"],
                                                H, Hp, O, Op)
    return prep


# ----------------------------- model wrapper --------------------------------


def model_forward(x, prep, output_dim):
    """x: (B, S, input_dim) -> (B, S, output_dim), float32."""
    x = x.astype(jnp.float32)
    B, S, D = x.shape
    Dp, Hp = prep["fc1_w_t"].shape
    Op = prep["fc4_w_t"].shape[1]

    # Pad batch to a multiple of 8 (sublanes) and features to a multiple of 128 (lanes).
    B_pad = _round_up(B, 8)
    x = jnp.pad(x, ((0, B_pad - B), (0, 0), (0, Dp - D)))

    # Time-major layout so the GRU kernel streams lane/sublane-dense (1, B, 3Hp) blocks.
    # Pre-cast to bf16: the kernel's matmul operand is bf16 anyway -> halves HBM read.
    x_t = jnp.transpose(x, (1, 0, 2)).reshape(S * B_pad, Dp).astype(jnp.bfloat16)
    M = S * B_pad
    TM = _choose_tm(M)

    # fc1 + gru1 input projection, hoisted out of the recurrence (one big matmul).
    gi1 = fc1_ih_proj(x_t, prep, TM).reshape(S, B_pad, 3 * Hp)

    # Fused 2-layer GRU recurrence (bf16 hidden-sequence writeback).
    h = fused_gru2(gi1, prep)                       # (S, B_pad, Hp) bf16

    # Fused MLP tail: fc2+ReLU -> fc3+ReLU -> dropout(identity) -> fc4 -> sigmoid.
    out = mlp_tail(h.reshape(M, Hp), prep, TM)      # (M, Op) f32
    out = out.reshape(S, B_pad, Op)[:, :B, :output_dim]
    return jnp.transpose(out, (1, 0, 2))            # (B, S, output_dim)


# ------------------------- pure-JAX reference --------------------------------


def _ref_gru(x, w_ih, w_hh, b_ih, b_hh):
    B, S, H = x.shape

    def step(h, xt):
        gi = xt @ w_ih.T + b_ih
        gh = h @ w_hh.T + b_hh
        r = jax.nn.sigmoid(gi[:, :H] + gh[:, :H])
        z = jax.nn.sigmoid(gi[:, H:2 * H] + gh[:, H:2 * H])
        n = jnp.tanh(gi[:, 2 * H:] + r * gh[:, 2 * H:])
        h_new = (1.0 - z) * n + z * h
        return h_new, h_new

    h0 = jnp.zeros((B, H), jnp.float32)
    _, ys = jax.lax.scan(step, h0, jnp.transpose(x, (1, 0, 2)))
    return jnp.transpose(ys, (1, 0, 2))


def ref_forward(x, p):
    x = x.astype(jnp.float32)
    h = x @ p["fc1_w"].T + p["fc1_b"]
    h = _ref_gru(h, p["gru1_wih"], p["gru1_whh"], p["gru1_bih"], p["gru1_bhh"])
    h = _ref_gru(h, p["gru2_wih"], p["gru2_whh"], p["gru2_bih"], p["gru2_bhh"])
    h = jnp.maximum(h @ p["fc2_w"].T + p["fc2_b"], 0.0)
    h = jnp.maximum(h @ p["fc3_w"].T + p["fc3_b"], 0.0)
    return jax.nn.sigmoid(h @ p["fc4_w"].T + p["fc4_b"])


# --------------------------------- main --------------------------------------

if __name__ == "__main__":
    # Small, forward-consistent shapes (original module: input_dim=667, hidden=256, out=1)
    B, S = 2, 8
    INPUT_DIM, HIDDEN_DIM, OUTPUT_DIM = 16, 32, 1

    params = init_params(jax.random.PRNGKey(42), INPUT_DIM, HIDDEN_DIM, OUTPUT_DIM)
    prep = prepare_params(params, INPUT_DIM, HIDDEN_DIM, OUTPUT_DIM)
    x = jax.random.normal(jax.random.PRNGKey(0), (B, S, INPUT_DIM), jnp.float32)

    fwd = jax.jit(model_forward, static_argnums=2)
    out = jax.block_until_ready(fwd(x, prep, OUTPUT_DIM))
    ref = jax.block_until_ready(ref_forward(x, params))

    assert out.shape == (B, S, OUTPUT_DIM), out.shape
    # bf16 matmul operands with f32 accumulation -> relaxed tolerance.
    np.testing.assert_allclose(np.asarray(out), np.asarray(ref), rtol=2e-2, atol=2e-2)

    print("KERNEL_OK")
</pallas_src>

<mosaic_0001>
module attributes {stable_mosaic.version = 11 : i64} {
  func.func @_fc1_proj_kernel(%arg0: i32, %arg1: memref<64x128xbf16, #tpu.memory_space<vmem>>, %arg2: memref<128x128xbf16, #tpu.memory_space<vmem>>, %arg3: memref<1x128xf32, #tpu.memory_space<vmem>>, %arg4: memref<128x384xbf16, #tpu.memory_space<vmem>>, %arg5: memref<1x384xf32, #tpu.memory_space<vmem>>, %arg6: memref<64x384xf32, #tpu.memory_space<vmem>>) attributes {dimension_semantics = [#tpu.dimension_semantics<parallel>], iteration_bounds = array<i64: 1>, scalar_prefetch = 0 : i64, scratch_operands = 0 : i64, tpu.core_type = #tpu.core_type<tc>, window_params = [{transform_indices = @transform_0, window_bounds = array<i64: 64, 128>}, {pipeline_mode = #tpu.pipeline_mode<synchronous>, transform_indices = @transform_1, window_bounds = array<i64: 128, 128>}, {pipeline_mode = #tpu.pipeline_mode<synchronous>, transform_indices = @transform_2, window_bounds = array<i64: 1, 128>}, {pipeline_mode = #tpu.pipeline_mode<synchronous>, transform_indices = @transform_3, window_bounds = array<i64: 128, 384>}, {pipeline_mode = #tpu.pipeline_mode<synchronous>, transform_indices = @transform_4, window_bounds = array<i64: 1, 384>}, {transform_indices = @transform_5, window_bounds = array<i64: 64, 384>}]} {
    %c0 = arith.constant 0 : index
    %c0_0 = arith.constant 0 : index
    %0 = vector.load %arg1[%c0, %c0_0] : memref<64x128xbf16, #tpu.memory_space<vmem>>, vector<64x128xbf16>
    %c0_1 = arith.constant 0 : index
    %c0_2 = arith.constant 0 : index
    %1 = vector.load %arg2[%c0_1, %c0_2] : memref<128x128xbf16, #tpu.memory_space<vmem>>, vector<128x128xbf16>
    %cst = arith.constant dense<0.000000e+00> : vector<64x128xf32>
    %2 = tpu.matmul %0, %1, %cst {dimension_numbers = #tpu.dot_dimension_numbers<[1], [0], [0], [1], [0, 0, 1, 1], [], []>} : vector<64x128xbf16>, vector<128x128xbf16>, vector<64x128xf32> -> vector<64x128xf32>
    %c0_3 = arith.constant 0 : index
    %c0_4 = arith.constant 0 : index
    %3 = vector.load %arg3[%c0_3, %c0_4] : memref<1x128xf32, #tpu.memory_space<vmem>>, vector<1x128xf32>
    %4 = vector.broadcast %3 : vector<1x128xf32> to vector<64x128xf32>
    %5 = arith.addf %2, %4 : vector<64x128xf32>
    %6 = arith.truncf %5 : vector<64x128xf32> to vector<64x128xbf16>
    %c0_5 = arith.constant 0 : index
    %c0_6 = arith.constant 0 : index
    %7 = vector.load %arg4[%c0_5, %c0_6] : memref<128x384xbf16, #tpu.memory_space<vmem>>, vector<128x384xbf16>
    %cst_7 = arith.constant dense<0.000000e+00> : vector<64x384xf32>
    %8 = tpu.matmul %6, %7, %cst_7 {dimension_numbers = #tpu.dot_dimension_numbers<[1], [0], [0], [1], [0, 0, 1, 1], [], []>} : vector<64x128xbf16>, vector<128x384xbf16>, vector<64x384xf32> -> vector<64x384xf32>
    %c0_8 = arith.constant 0 : index
    %c0_9 = arith.constant 0 : index
    %9 = vector.load %arg5[%c0_8, %c0_9] : memref<1x384xf32, #tpu.memory_space<vmem>>, vector<1x384xf32>
    %10 = vector.broadcast %9 : vector<1x384xf32> to vector<64x384xf32>
    %11 = arith.addf %8, %10 : vector<64x384xf32>
    %c0_10 = arith.constant 0 : index
    %c0_11 = arith.constant 0 : index
    %12 = vector.load %arg6[%c0_10, %c0_11] : memref<64x384xf32, #tpu.memory_space<vmem>>, vector<64x384xf32>
    tpu.vector_store %arg6[%c0_10, %c0_11], %11 {strides = array<i32>} : memref<64x384xf32, #tpu.memory_space<vmem>>, vector<64x384xf32>,
    return
  }
  func.func @transform_0(%arg0: i32) -> (i32, i32) {
    %c0_i32 = arith.constant 0 : i32
    %c0_i32_0 = arith.constant 0 : i32
    return %arg0, %c0_i32 : i32, i32
  }
  func.func @transform_1(%arg0: i32) -> (i32, i32) {
    %c0_i32 = arith.constant 0 : i32
    %c0_i32_0 = arith.constant 0 : i32
    %c0_i32_1 = arith.constant 0 : i32
    return %c0_i32, %c0_i32_0 : i32, i32
  }
  func.func @transform_2(%arg0: i32) -> (i32, i32) {
    %c0_i32 = arith.constant 0 : i32
    %c0_i32_0 = arith.constant 0 : i32
    %c0_i32_1 = arith.constant 0 : i32
    return %c0_i32, %c0_i32_0 : i32, i32
  }
  func.func @transform_3(%arg0: i32) -> (i32, i32) {
    %c0_i32 = arith.constant 0 : i32
    %c0_i32_0 = arith.constant 0 : i32
    %c0_i32_1 = arith.constant 0 : i32
    return %c0_i32, %c0_i32_0 : i32, i32
  }
  func.func @transform_4(%arg0: i32) -> (i32, i32) {
    %c0_i32 = arith.constant 0 : i32
    %c0_i32_0 = arith.constant 0 : i32
    %c0_i32_1 = arith.constant 0 : i32
    return %c0_i32, %c0_i32_0 : i32, i32
  }
  func.func @transform_5(%arg0: i32) -> (i32, i32) {
    %c0_i32 = arith.constant 0 : i32
    %c0_i32_0 = arith.constant 0 : i32
    return %arg0, %c0_i32 : i32, i32
  }
}

module attributes {stable_mosaic.version = 11 : i64} {
  func.func @_gru2_kernel(%arg0: i32, %arg1: i32, %arg2: memref<1x8x384xf32, #tpu.memory_space<vmem>>, %arg3: memref<128x384xbf16, #tpu.memory_space<vmem>>, %arg4: memref<1x384xf32, #tpu.memory_space<vmem>>, %arg5: memref<128x384xbf16, #tpu.memory_space<vmem>>, %arg6: memref<1x384xf32, #tpu.memory_space<vmem>>, %arg7: memref<128x384xbf16, #tpu.memory_space<vmem>>, %arg8: memref<1x384xf32, #tpu.memory_space<vmem>>, %arg9: memref<1x8x128xbf16, #tpu.memory_space<vmem>>, %arg10: memref<8x128xf32, #tpu.memory_space<vmem>>, %arg11: memref<8x128xf32, #tpu.memory_space<vmem>>) attributes {dimension_semantics = [#tpu.dimension_semantics<parallel>, #tpu.dimension_semantics<arbitrary>], iteration_bounds = array<i64: 1, 8>, scalar_prefetch = 0 : i64, scratch_operands = 2 : i64, tpu.core_type = #tpu.core_type<tc>, window_params = [{transform_indices = @transform_0, window_bounds = array<i64: 1, 8, 384>}, {pipeline_mode = #tpu.pipeline_mode<synchronous>, transform_indices = @transform_1, window_bounds = array<i64: 128, 384>}, {pipeline_mode = #tpu.pipeline_mode<synchronous>, transform_indices = @transform_2, window_bounds = array<i64: 1, 384>}, {pipeline_mode = #tpu.pipeline_mode<synchronous>, transform_indices = @transform_3, window_bounds = array<i64: 128, 384>}, {pipeline_mode = #tpu.pipeline_mode<synchronous>, transform_indices = @transform_4, window_bounds = array<i64: 1, 384>}, {pipeline_mode = #tpu.pipeline_mode<synchronous>, transform_indices = @transform_5, window_bounds = array<i64: 128, 384>}, {pipeline_mode = #tpu.pipeline_mode<synchronous>, transform_indices = @transform_6, window_bounds = array<i64: 1, 384>}, {transform_indices = @transform_7, window_bounds = array<i64: 1, 8, 128>}]} {
    %c0_i32 = arith.constant 0 : i32
    %0 = arith.cmpi eq, %arg1, %c0_i32 : i32
    %1 = arith.extui %0 : i1 to i32
    %c0_i32_0 = arith.constant 0 : i32
    %2 = arith.cmpi ne, %1, %c0_i32_0 : i32
    scf.if %2 {
      %cst_34 = arith.constant 0.000000e+00 : f32
      %83 = vector.broadcast %cst_34 : f32 to vector<8x128xf32>
      %c0_35 = arith.constant 0 : index
      %c0_36 = arith.constant 0 : index
      %84 = vector.load %arg10[%c0_35, %c0_36] : memref<8x128xf32, #tpu.memory_space<vmem>>, vector<8x128xf32>
      tpu.vector_store %arg10[%c0_35, %c0_36], %83 {strides = array<i32>} : memref<8x128xf32, #tpu.memory_space<vmem>>, vector<8x128xf32>,
      %cst_37 = arith.constant 0.000000e+00 : f32
      %85 = vector.broadcast %cst_37 : f32 to vector<8x128xf32>
      %c0_38 = arith.constant 0 : index
      %c0_39 = arith.constant 0 : index
      %86 = vector.load %arg11[%c0_38, %c0_39] : memref<8x128xf32, #tpu.memory_space<vmem>>, vector<8x128xf32>
      tpu.vector_store %arg11[%c0_38, %c0_39], %85 {strides = array<i32>} : memref<8x128xf32, #tpu.memory_space<vmem>>, vector<8x128xf32>,
    } else {
    }
    %c0 = arith.constant 0 : index
    %c0_1 = arith.constant 0 : index
    %3 = vector.load %arg10[%c0, %c0_1] : memref<8x128xf32, #tpu.memory_space<vmem>>, vector<8x128xf32>
    %c0_2 = arith.constant 0 : index
    %c0_3 = arith.constant 0 : index
    %4 = vector.load %arg11[%c0_2, %c0_3] : memref<8x128xf32, #tpu.memory_space<vmem>>, vector<8x128xf32>
    %c0_4 = arith.constant 0 : index
    %c0_5 = arith.constant 0 : index
    %c0_6 = arith.constant 0 : index
    %5 = vector.load %arg2[%c0_4, %c0_5, %c0_6] : memref<1x8x384xf32, #tpu.memory_space<vmem>>, vector<1x8x384xf32>
    %6 = vector.shape_cast %5 : vector<1x8x384xf32> to vector<8x384xf32>
    %7 = arith.truncf %3 : vector<8x128xf32> to vector<8x128xbf16>
    %c0_7 = arith.constant 0 : index
    %c0_8 = arith.constant 0 : index
    %8 = vector.load %arg3[%c0_7, %c0_8] : memref<128x384xbf16, #tpu.memory_space<vmem>>, vector<128x384xbf16>
    %cst = arith.constant dense<0.000000e+00> : vector<8x384xf32>
    %9 = tpu.matmul %7, %8, %cst {dimension_numbers = #tpu.dot_dimension_numbers<[1], [0], [0], [1], [0, 0, 1, 1], [], []>} : vector<8x128xbf16>, vector<128x384xbf16>, vector<8x384xf32> -> vector<8x384xf32>
    %c0_9 = arith.constant 0 : index
    %c0_10 = arith.constant 0 : index
    %10 = vector.load %arg4[%c0_9, %c0_10] : memref<1x384xf32, #tpu.memory_space<vmem>>, vector<1x384xf32>
    %11 = vector.broadcast %10 : vector<1x384xf32> to vector<8x384xf32>
    %12 = arith.addf %9, %11 : vector<8x384xf32>
    %13 = arith.truncf %4 : vector<8x128xf32> to vector<8x128xbf16>
    %c0_11 = arith.constant 0 : index
    %c0_12 = arith.constant 0 : index
    %14 = vector.load %arg7[%c0_11, %c0_12] : memref<128x384xbf16, #tpu.memory_space<vmem>>, vector<128x384xbf16>
    %cst_13 = arith.constant dense<0.000000e+00> : vector<8x384xf32>
    %15 = tpu.matmul %13, %14, %cst_13 {dimension_numbers = #tpu.dot_dimension_numbers<[1], [0], [0], [1], [0, 0, 1, 1], [], []>} : vector<8x128xbf16>, vector<128x384xbf16>, vector<8x384xf32> -> vector<8x384xf32>
    %c0_14 = arith.constant 0 : index
    %c0_15 = arith.constant 0 : index
    %16 = vector.load %arg8[%c0_14, %c0_15] : memref<1x384xf32, #tpu.memory_space<vmem>>, vector<1x384xf32>
    %17 = vector.broadcast %16 : vector<1x384xf32> to vector<8x384xf32>
    %18 = arith.addf %15, %17 : vector<8x384xf32>
    %19 = vector.extract_strided_slice %6 {offsets = [0, 0], sizes = [8, 128], strides = [1, 1]} : vector<8x384xf32> to vector<8x128xf32>
    %20 = vector.extract_strided_slice %12 {offsets = [0, 0], sizes = [8, 128], strides = [1, 1]} : vector<8x384xf32> to vector<8x128xf32>
    %21 = arith.addf %19, %20 : vector<8x128xf32>
    %22 = arith.negf %21 : vector<8x128xf32>
    %23 = math.exp %22 : vector<8x128xf32>
    %cst_16 = arith.constant 1.000000e+00 : f32
    %24 = vector.broadcast %cst_16 : f32 to vector<8x128xf32>
    %25 = arith.addf %24, %23 : vector<8x128xf32>
    %26 = arith.divf %24, %25 : vector<8x128xf32>
    %27 = vector.extract_strided_slice %6 {offsets = [0, 128], sizes = [8, 128], strides = [1, 1]} : vector<8x384xf32> to vector<8x128xf32>
    %28 = vector.extract_strided_slice %12 {offsets = [0, 128], sizes = [8, 128], strides = [1, 1]} : vector<8x384xf32> to vector<8x128xf32>
    %29 = arith.addf %27, %28 : vector<8x128xf32>
    %30 = arith.negf %29 : vector<8x128xf32>
    %31 = math.exp %30 : vector<8x128xf32>
    %cst_17 = arith.constant 1.000000e+00 : f32
    %32 = vector.broadcast %cst_17 : f32 to vector<8x128xf32>
    %33 = arith.addf %32, %31 : vector<8x128xf32>
    %34 = arith.divf %32, %33 : vector<8x128xf32>
    %35 = vector.extract_strided_slice %6 {offsets = [0, 256], sizes = [8, 128], strides = [1, 1]} : vector<8x384xf32> to vector<8x128xf32>
    %36 = vector.extract_strided_slice %12 {offsets = [0, 256], sizes = [8, 128], strides = [1, 1]} : vector<8x384xf32> to vector<8x128xf32>
    %37 = arith.mulf %26, %36 : vector<8x128xf32>
    %38 = arith.addf %35, %37 : vector<8x128xf32>
    %39 = math.tanh %38 : vector<8x128xf32>
    %cst_18 = arith.constant 1.000000e+00 : f32
    %40 = vector.broadcast %cst_18 : f32 to vector<8x128xf32>
    %41 = arith.subf %40, %34 : vector<8x128xf32>
    %42 = arith.mulf %41, %39 : vector<8x128xf32>
    %43 = arith.mulf %34, %3 : vector<8x128xf32>
    %44 = arith.addf %42, %43 : vector<8x128xf32>
    %45 = arith.truncf %44 : vector<8x128xf32> to vector<8x128xbf16>
    %c0_19 = arith.constant 0 : index
    %c0_20 = arith.constant 0 : index
    %46 = vector.load %arg5[%c0_19, %c0_20] : memref<128x384xbf16, #tpu.memory_space<vmem>>, vector<128x384xbf16>
    %cst_21 = arith.constant dense<0.000000e+00> : vector<8x384xf32>
    %47 = tpu.matmul %45, %46, %cst_21 {dimension_numbers = #tpu.dot_dimension_numbers<[1], [0], [0], [1], [0, 0, 1, 1], [], []>} : vector<8x128xbf16>, vector<128x384xbf16>, vector<8x384xf32> -> vector<8x384xf32>
    %c0_22 = arith.constant 0 : index
    %c0_23 = arith.constant 0 : index
    %48 = vector.load %arg6[%c0_22, %c0_23] : memref<1x384xf32, #tpu.memory_space<vmem>>, vector<1x384xf32>
    %49 = vector.broadcast %48 : vector<1x384xf32> to vector<8x384xf32>
    %50 = arith.addf %47, %49 : vector<8x384xf32>
    %51 = vector.extract_strided_slice %50 {offsets = [0, 0], sizes = [8, 128], strides = [1, 1]} : vector<8x384xf32> to vector<8x128xf32>
    %52 = vector.extract_strided_slice %18 {offsets = [0, 0], sizes = [8, 128], strides = [1, 1]} : vector<8x384xf32> to vector<8x128xf32>
    %53 = arith.addf %51, %52 : vector<8x128xf32>
    %54 = arith.negf %53 : vector<8x128xf32>
    %55 = math.exp %54 : vector<8x128xf32>
    %cst_24 = arith.constant 1.000000e+00 : f32
    %56 = vector.broadcast %cst_24 : f32 to vector<8x128xf32>
    %57 = arith.addf %56, %55 : vector<8x128xf32>
    %58 = arith.divf %56, %57 : vector<8x128xf32>
    %59 = vector.extract_strided_slice %50 {offsets = [0, 128], sizes = [8, 128], strides = [1, 1]} : vector<8x384xf32> to vector<8x128xf32>
    %60 = vector.extract_strided_slice %18 {offsets = [0, 128], sizes = [8, 128], strides = [1, 1]} : vector<8x384xf32> to vector<8x128xf32>
    %61 = arith.addf %59, %60 : vector<8x128xf32>
    %62 = arith.negf %61 : vector<8x128xf32>
    %63 = math.exp %62 : vector<8x128xf32>
    %cst_25 = arith.constant 1.000000e+00 : f32
    %64 = vector.broadcast %cst_25 : f32 to vector<8x128xf32>
    %65 = arith.addf %64, %63 : vector<8x128xf32>
    %66 = arith.divf %64, %65 : vector<8x128xf32>
    %67 = vector.extract_strided_slice %50 {offsets = [0, 256], sizes = [8, 128], strides = [1, 1]} : vector<8x384xf32> to vector<8x128xf32>
    %68 = vector.extract_strided_slice %18 {offsets = [0, 256], sizes = [8, 128], strides = [1, 1]} : vector<8x384xf32> to vector<8x128xf32>
    %69 = arith.mulf %58, %68 : vector<8x128xf32>
    %70 = arith.addf %67, %69 : vector<8x128xf32>
    %71 = math.tanh %70 : vector<8x128xf32>
    %cst_26 = arith.constant 1.000000e+00 : f32
    %72 = vector.broadcast %cst_26 : f32 to vector<8x128xf32>
    %73 = arith.subf %72, %66 : vector<8x128xf32>
    %74 = arith.mulf %73, %71 : vector<8x128xf32>
    %75 = arith.mulf %66, %4 : vector<8x128xf32>
    %76 = arith.addf %74, %75 : vector<8x128xf32>
    %c0_27 = arith.constant 0 : index
    %c0_28 = arith.constant 0 : index
    %77 = vector.load %arg10[%c0_27, %c0_28] : memref<8x128xf32, #tpu.memory_space<vmem>>, vector<8x128xf32>
    tpu.vector_store %arg10[%c0_27, %c0_28], %44 {strides = array<i32>} : memref<8x128xf32, #tpu.memory_space<vmem>>, vector<8x128xf32>,
    %c0_29 = arith.constant 0 : index
    %c0_30 = arith.constant 0 : index
    %78 = vector.load %arg11[%c0_29, %c0_30] : memref<8x128xf32, #tpu.memory_space<vmem>>, vector<8x128xf32>
    tpu.vector_store %arg11[%c0_29, %c0_30], %76 {strides = array<i32>} : memref<8x128xf32, #tpu.memory_space<vmem>>, vector<8x128xf32>,
    %79 = arith.truncf %76 : vector<8x128xf32> to vector<8x128xbf16>
    %c0_31 = arith.constant 0 : index
    %c0_32 = arith.constant 0 : index
    %c0_33 = arith.constant 0 : index
    %80 = vector.load %arg9[%c0_31, %c0_32, %c0_33] : memref<1x8x128xbf16, #tpu.memory_space<vmem>>, vector<1x8x128xbf16>
    %81 = vector.shape_cast %80 : vector<1x8x128xbf16> to vector<8x128xbf16>
    %82 = vector.shape_cast %79 : vector<8x128xbf16> to vector<1x8x128xbf16>
    tpu.vector_store %arg9[%c0_31, %c0_32, %c0_33], %82 {strides = array<i32>} : memref<1x8x128xbf16, #tpu.memory_space<vmem>>, vector<1x8x128xbf16>,
    return
  }
  func.func @transform_0(%arg0: i32, %arg1: i32) -> (i32, i32, i32) {
    %c0_i32 = arith.constant 0 : i32
    %c0_i32_0 = arith.constant 0 : i32
    return %arg1, %arg0, %c0_i32 : i32, i32, i32
  }
  func.func @transform_1(%arg0: i32, %arg1: i32) -> (i32, i32) {
    %c0_i32 = arith.constant 0 : i32
    %c0_i32_0 = arith.constant 0 : i32
    %c0_i32_1 = arith.constant 0 : i32
    return %c0_i32, %c0_i32_0 : i32, i32
  }
  func.func @transform_2(%arg0: i32, %arg1: i32) -> (i32, i32) {
    %c0_i32 = arith.constant 0 : i32
    %c0_i32_0 = arith.constant 0 : i32
    %c0_i32_1 = arith.constant 0 : i32
    return %c0_i32, %c0_i32_0 : i32, i32
  }
  func.func @transform_3(%arg0: i32, %arg1: i32) -> (i32, i32) {
    %c0_i32 = arith.constant 0 : i32
    %c0_i32_0 = arith.constant 0 : i32
    %c0_i32_1 = arith.constant 0 : i32
    return %c0_i32, %c0_i32_0 : i32, i32
  }
  func.func @transform_4(%arg0: i32, %arg1: i32) -> (i32, i32) {
    %c0_i32 = arith.constant 0 : i32
    %c0_i32_0 = arith.constant 0 : i32
    %c0_i32_1 = arith.constant 0 : i32
    return %c0_i32, %c0_i32_0 : i32, i32
  }
  func.func @transform_5(%arg0: i32, %arg1: i32) -> (i32, i32) {
    %c0_i32 = arith.constant 0 : i32
    %c0_i32_0 = arith.constant 0 : i32
    %c0_i32_1 = arith.constant 0 : i32
    return %c0_i32, %c0_i32_0 : i32, i32
  }
  func.func @transform_6(%arg0: i32, %arg1: i32) -> (i32, i32) {
    %c0_i32 = arith.constant 0 : i32
    %c0_i32_0 = arith.constant 0 : i32
    %c0_i32_1 = arith.constant 0 : i32
    return %c0_i32, %c0_i32_0 : i32, i32
  }
  func.func @transform_7(%arg0: i32, %arg1: i32) -> (i32, i32, i32) {
    %c0_i32 = arith.constant 0 : i32
    %c0_i32_0 = arith.constant 0 : i32
    return %arg1, %arg0, %c0_i32 : i32, i32, i32
  }
}

module attributes {stable_mosaic.version = 11 : i64} {
  func.func @_mlp_kernel(%arg0: i32, %arg1: memref<64x128xbf16, #tpu.memory_space<vmem>>, %arg2: memref<128x128xbf16, #tpu.memory_space<vmem>>, %arg3: memref<1x128xf32, #tpu.memory_space<vmem>>, %arg4: memref<128x128xbf16, #tpu.memory_space<vmem>>, %arg5: memref<1x128xf32, #tpu.memory_space<vmem>>, %arg6: memref<128x128xbf16, #tpu.memory_space<vmem>>, %arg7: memref<1x128xf32, #tpu.memory_space<vmem>>, %arg8: memref<64x128xf32, #tpu.memory_space<vmem>>) attributes {dimension_semantics = [#tpu.dimension_semantics<parallel>], iteration_bounds = array<i64: 1>, scalar_prefetch = 0 : i64, scratch_operands = 0 : i64, tpu.core_type = #tpu.core_type<tc>, window_params = [{transform_indices = @transform_0, window_bounds = array<i64: 64, 128>}, {pipeline_mode = #tpu.pipeline_mode<synchronous>, transform_indices = @transform_1, window_bounds = array<i64: 128, 128>}, {pipeline_mode = #tpu.pipeline_mode<synchronous>, transform_indices = @transform_2, window_bounds = array<i64: 1, 128>}, {pipeline_mode = #tpu.pipeline_mode<synchronous>, transform_indices = @transform_3, window_bounds = array<i64: 128, 128>}, {pipeline_mode = #tpu.pipeline_mode<synchronous>, transform_indices = @transform_4, window_bounds = array<i64: 1, 128>}, {pipeline_mode = #tpu.pipeline_mode<synchronous>, transform_indices = @transform_5, window_bounds = array<i64: 128, 128>}, {pipeline_mode = #tpu.pipeline_mode<synchronous>, transform_indices = @transform_6, window_bounds = array<i64: 1, 128>}, {transform_indices = @transform_7, window_bounds = array<i64: 64, 128>}]} {
    %c0 = arith.constant 0 : index
    %c0_0 = arith.constant 0 : index
    %0 = vector.load %arg1[%c0, %c0_0] : memref<64x128xbf16, #tpu.memory_space<vmem>>, vector<64x128xbf16>
    %c0_1 = arith.constant 0 : index
    %c0_2 = arith.constant 0 : index
    %1 = vector.load %arg2[%c0_1, %c0_2] : memref<128x128xbf16, #tpu.memory_space<vmem>>, vector<128x128xbf16>
    %cst = arith.constant dense<0.000000e+00> : vector<64x128xf32>
    %2 = tpu.matmul %0, %1, %cst {dimension_numbers = #tpu.dot_dimension_numbers<[1], [0], [0], [1], [0, 0, 1, 1], [], []>} : vector<64x128xbf16>, vector<128x128xbf16>, vector<64x128xf32> -> vector<64x128xf32>
    %c0_3 = arith.constant 0 : index
    %c0_4 = arith.constant 0 : index
    %3 = vector.load %arg3[%c0_3, %c0_4] : memref<1x128xf32, #tpu.memory_space<vmem>>, vector<1x128xf32>
    %4 = vector.broadcast %3 : vector<1x128xf32> to vector<64x128xf32>
    %5 = arith.addf %2, %4 : vector<64x128xf32>
    %cst_5 = arith.constant 0.000000e+00 : f32
    %6 = vector.broadcast %cst_5 : f32 to vector<64x128xf32>
    %7 = arith.maximumf %5, %6 : vector<64x128xf32>
    %8 = arith.truncf %7 : vector<64x128xf32> to vector<64x128xbf16>
    %c0_6 = arith.constant 0 : index
    %c0_7 = arith.constant 0 : index
    %9 = vector.load %arg4[%c0_6, %c0_7] : memref<128x128xbf16, #tpu.memory_space<vmem>>, vector<128x128xbf16>
    %cst_8 = arith.constant dense<0.000000e+00> : vector<64x128xf32>
    %10 = tpu.matmul %8, %9, %cst_8 {dimension_numbers = #tpu.dot_dimension_numbers<[1], [0], [0], [1], [0, 0, 1, 1], [], []>} : vector<64x128xbf16>, vector<128x128xbf16>, vector<64x128xf32> -> vector<64x128xf32>
    %c0_9 = arith.constant 0 : index
    %c0_10 = arith.constant 0 : index
    %11 = vector.load %arg5[%c0_9, %c0_10] : memref<1x128xf32, #tpu.memory_space<vmem>>, vector<1x128xf32>
    %12 = vector.broadcast %11 : vector<1x128xf32> to vector<64x128xf32>
    %13 = arith.addf %10, %12 : vector<64x128xf32>
    %cst_11 = arith.constant 0.000000e+00 : f32
    %14 = vector.broadcast %cst_11 : f32 to vector<64x128xf32>
    %15 = arith.maximumf %13, %14 : vector<64x128xf32>
    %16 = arith.truncf %15 : vector<64x128xf32> to vector<64x128xbf16>
    %c0_12 = arith.constant 0 : index
    %c0_13 = arith.constant 0 : index
    %17 = vector.load %arg6[%c0_12, %c0_13] : memref<128x128xbf16, #tpu.memory_space<vmem>>, vector<128x128xbf16>
    %cst_14 = arith.constant dense<0.000000e+00> : vector<64x128xf32>
    %18 = tpu.matmul %16, %17, %cst_14 {dimension_numbers = #tpu.dot_dimension_numbers<[1], [0], [0], [1], [0, 0, 1, 1], [], []>} : vector<64x128xbf16>, vector<128x128xbf16>, vector<64x128xf32> -> vector<64x128xf32>
    %c0_15 = arith.constant 0 : index
    %c0_16 = arith.constant 0 : index
    %19 = vector.load %arg7[%c0_15, %c0_16] : memref<1x128xf32, #tpu.memory_space<vmem>>, vector<1x128xf32>
    %20 = vector.broadcast %19 : vector<1x128xf32> to vector<64x128xf32>
    %21 = arith.addf %18, %20 : vector<64x128xf32>
    %22 = arith.negf %21 : vector<64x128xf32>
    %23 = math.exp %22 : vector<64x128xf32>
    %cst_17 = arith.constant 1.000000e+00 : f32
    %24 = vector.broadcast %cst_17 : f32 to vector<64x128xf32>
    %25 = arith.addf %24, %23 : vector<64x128xf32>
    %26 = arith.divf %24, %25 : vector<64x128xf32>
    %c0_18 = arith.constant 0 : index
    %c0_19 = arith.constant 0 : index
    %27 = vector.load %arg8[%c0_18, %c0_19] : memref<64x128xf32, #tpu.memory_space<vmem>>, vector<64x128xf32>
    tpu.vector_store %arg8[%c0_18, %c0_19], %26 {strides = array<i32>} : memref<64x128xf32, #tpu.memory_space<vmem>>, vector<64x128xf32>,
    return
  }
  func.func @transform_0(%arg0: i32) -> (i32, i32) {
    %c0_i32 = arith.constant 0 : i32
    %c0_i32_0 = arith.constant 0 : i32
    return %arg0, %c0_i32 : i32, i32
  }
  func.func @transform_1(%arg0: i32) -> (i32, i32) {
    %c0_i32 = arith.constant 0 : i32
    %c0_i32_0 = arith.constant 0 : i32
    %c0_i32_1 = arith.constant 0 : i32
    return %c0_i32, %c0_i32_0 : i32, i32
  }
  func.func @transform_2(%arg0: i32) -> (i32, i32) {
    %c0_i32 = arith.constant 0 : i32
    %c0_i32_0 = arith.constant 0 : i32
    %c0_i32_1 = arith.constant 0 : i32
    return %c0_i32, %c0_i32_0 : i32, i32
  }
  func.func @transform_3(%arg0: i32) -> (i32, i32) {
    %c0_i32 = arith.constant 0 : i32
    %c0_i32_0 = arith.constant 0 : i32
    %c0_i32_1 = arith.constant 0 : i32
    return %c0_i32, %c0_i32_0 : i32, i32
  }
  func.func @transform_4(%arg0: i32) -> (i32, i32) {
    %c0_i32 = arith.constant 0 : i32
    %c0_i32_0 = arith.constant 0 : i32
    %c0_i32_1 = arith.constant 0 : i32
    return %c0_i32, %c0_i32_0 : i32, i32
  }
  func.func @transform_5(%arg0: i32) -> (i32, i32) {
    %c0_i32 = arith.constant 0 : i32
    %c0_i32_0 = arith.constant 0 : i32
    %c0_i32_1 = arith.constant 0 : i32
    return %c0_i32, %c0_i32_0 : i32, i32
  }
  func.func @transform_6(%arg0: i32) -> (i32, i32) {
    %c0_i32 = arith.constant 0 : i32
    %c0_i32_0 = arith.constant 0 : i32
    %c0_i32_1 = arith.constant 0 : i32
    return %c0_i32, %c0_i32_0 : i32, i32
  }
  func.func @transform_7(%arg0: i32) -> (i32, i32) {
    %c0_i32 = arith.constant 0 : i32
    %c0_i32_0 = arith.constant 0 : i32
    return %arg0, %c0_i32 : i32, i32
  }
}

</mosaic_0001>

<llo_original>
// kernel: model_forward.3
$region0: #{model_forward.3}
  #allocation0 [shape = 'u32[]', space=smem, size = 0x4, offset = 0x4, fixed_abs, tag = 'smem constant byte address 0x4 - core index']
  #allocation1 [shape = 'u32[144,128]{1,0:T(1,128)}', space=vmem, size = 0x12000, scoped, tag = 'internal scratch']
  %s0 = inlined_call_operand.vmem [shape: bf16[64,128], index: 0, kind: input, shape index: {}]
  %s1 = inlined_call_operand.hbm [shape: bf16[128,128], index: 1, kind: input, shape index: {}]
  %s2 = inlined_call_operand.vmem [shape: f32[1,128], index: 2, kind: input, shape index: {}]
  %s3 = inlined_call_operand.hbm [shape: bf16[128,384], index: 3, kind: input, shape index: {}]
  %s4 = inlined_call_operand.vmem [shape: f32[1,384], index: 4, kind: input, shape index: {}]
  %s5 = inlined_call_operand.vmem [shape: f32[64,384], index: 5, kind: output, shape index: {}]
  %s6 = sld [smem:[#allocation0]]
  $region38: #{model_forward.3} parent=0
    _
  %s8 = ssub.s32 1, %s6
  %s9 = scalar_select 0, %s8, %s6
  $region1: #{model_forward.3} parent=0
    #allocation2 [shape = 'u8[32768]{0}', space=vmem, size = 0x8000, scoped, tag = 'input window, operand 1, single buffered']
    #allocation3 [shape = 's32[1]{0}', space=sflag, size = 0x4, scoped, tag = 'scoped memory for model_forward.3']
    #allocation4 [shape = 'u8[98304]{0}', space=vmem, size = 0x18000, scoped, tag = 'input window, operand 3, single buffered']
    #allocation5 [shape = 's32[1]{0}', space=sflag, size = 0x4, scoped, tag = 'scoped memory for model_forward.3']
    %10 = vsyncpa [#allocation3], 0
    %11 = vsyncpa [#allocation5], 0
    // Predicated region
    $region2: #{model_forward.3} parent=1 // pred_check
      _
    $region3: #{model_forward.3} parent=1 // pred_check_branch
      %13 = sbr.rel (0) target = $region5
    $region4: #{model_forward.3} parent=1 // pred_region
      _
    $region5: #{model_forward.3} parent=1 // pred_fallthru
      _
    // Predicated region
    $region6: #{model_forward.3} parent=1 // pred_check
      _
    $region7: #{model_forward.3} parent=1 // pred_check_branch
      %15 = sbr.rel (0) target = $region9
    $region8: #{model_forward.3} parent=1 // pred_region
      %s17 = ssub.s32 1024, 1024
      %18 = vsyncadd [#allocation3], %s17
      %s19 = sshll.u32 [#allocation2], 4
      %s20 = int_to_ptr.vmem [resolvable:$true] %s19
      %25 = dma.hbm_to_vmem [thread:$0]  %s1, 1024, %s20, [#allocation3], 64, 64, 4
    $region9: #{model_forward.3} parent=1 // pred_fallthru
      _
    // Predicated region
    $region10: #{model_forward.3} parent=1 // pred_check
      _
    $region11: #{model_forward.3} parent=1 // pred_check_branch
      %27 = sbr.rel (0) target = $region13
    $region12: #{model_forward.3} parent=1 // pred_region
      _
    $region13: #{model_forward.3} parent=1 // pred_fallthru
      _
    // Predicated region
    $region14: #{model_forward.3} parent=1 // pred_check
      _
    $region15: #{model_forward.3} parent=1 // pred_check_branch
      %29 = sbr.rel (0) target = $region17
    $region16: #{model_forward.3} parent=1 // pred_region
      %s31 = ssub.s32 3072, 3072
      %32 = vsyncadd [#allocation5], %s31
      %s33 = sshll.u32 [#allocation4], 4
      %s34 = int_to_ptr.vmem [resolvable:$true] %s33
      %39 = dma.hbm_to_vmem [thread:$0]  %s3, 3072, %s34, [#allocation5], 192, 192, 12
    $region17: #{model_forward.3} parent=1 // pred_fallthru
      _
    // Predicated region
    $region18: #{model_forward.3} parent=1 // pred_check
      _
    $region19: #{model_forward.3} parent=1 // pred_check_branch
      %41 = sbr.rel (0) target = $region21
    $region20: #{model_forward.3} parent=1 // pred_region
      _
    $region21: #{model_forward.3} parent=1 // pred_fallthru
      _
    // Predicated region
    $region22: #{model_forward.3} parent=1 // pred_check
      _
    $region23: #{model_forward.3} parent=1 // pred_check_branch
      %43 = sbr.rel (0) target = $region25
    $region24: #{model_forward.3} parent=1 // pred_region
      %44 = dma.done [#allocation3], 1024
    $region25: #{model_forward.3} parent=1 // pred_fallthru
      _
    // Predicated region
    $region26: #{model_forward.3} parent=1 // pred_check
      _
    $region27: #{model_forward.3} parent=1 // pred_check_branch
      %46 = sbr.rel (0) target = $region29
    $region28: #{model_forward.3} parent=1 // pred_region
      %47 = dma.done [#allocation5], 3072
    $region29: #{model_forward.3} parent=1 // pred_fallthru
      _
    %v49 = vld [vmem:[%s0] sm:$0xf]
    %v50 = vld [vmem:[%s0 + $0x4] sm:$0xf]
    %v51 = vld [vmem:[%s0 + $0x8] sm:$0xf]
    %v52 = vld [vmem:[%s0 + $0xc] sm:$0xf]
    %v53 = vld [vmem:[%s0 + $0x10] sm:$0xf]
    %v54 = vld [vmem:[%s0 + $0x14] sm:$0xf]
    %v55 = vld [vmem:[%s0 + $0x18] sm:$0xf]
    %v56 = vld [vmem:[%s0 + $0x1c] sm:$0xf]
    %v57 = vld [vmem:[#allocation2] sm:$0xf]
    %v58 = vld [vmem:[#allocation2 + $0x4] sm:$0xf]
    %v59 = vld [vmem:[#allocation2 + $0x8] sm:$0xf]
    %v60 = vld [vmem:[#allocation2 + $0xc] sm:$0xf]
    %v61 = vld [vmem:[#allocation2 + $0x10] sm:$0xf]
    %v62 = vld [vmem:[#allocation2 + $0x14] sm:$0xf]
    %v63 = vld [vmem:[#allocation2 + $0x18] sm:$0xf]
    %v64 = vld [vmem:[#allocation2 + $0x1c] sm:$0xf]
    %v65 = vld [vmem:[#allocation2 + $0x20] sm:$0xf]
    %v66 = vld [vmem:[#allocation2 + $0x24] sm:$0xf]
    %v67 = vld [vmem:[#allocation2 + $0x28] sm:$0xf]
    %v68 = vld [vmem:[#allocation2 + $0x2c] sm:$0xf]
    %v69 = vld [vmem:[#allocation2 + $0x30] sm:$0xf]
    %v70 = vld [vmem:[#allocation2 + $0x34] sm:$0xf]
    %v71 = vld [vmem:[#allocation2 + $0x38] sm:$0xf]
    %v72 = vld [vmem:[#allocation2 + $0x3c] sm:$0xf]
    %v73 = vld [vmem:[%s2] sm:$0x1]
    %v75 = vlaneseq
    %v76 = vshrl.u32 %v75, 7
    %v77 = vsub.s32 0, %v76
    %v78 = vrot.slane %v73, %v77
    %v88 = vunpack.c.l.b16 %v49
    %v89 = vunpack.c.l.b16 %v50
    %v90 = vunpack.c.l.b16 %v51
    %v91 = vunpack.c.l.b16 %v52
    %v92 = vunpack.c.l.b16 %v53
    %v93 = vunpack.c.l.b16 %v54
    %v94 = vunpack.c.l.b16 %v55
    %v95 = vunpack.c.l.b16 %v56
    %v96 = vpack.c.b16 %v89, %v88
    %v97 = vpack.c.b16 %v91, %v90
    %v98 = vpack.c.b16 %v93, %v92
    %v99 = vpack.c.b16 %v95, %v94
    %v120 = vunpack.c.l.b16 %v57
    %v121 = vunpack.c.l.b16 %v58
    %v122 = vunpack.c.l.b16 %v59
    %v123 = vunpack.c.l.b16 %v60
    %v124 = vunpack.c.l.b16 %v61
    %v125 = vunpack.c.l.b16 %v62
    %v126 = vunpack.c.l.b16 %v63
    %v127 = vunpack.c.l.b16 %v64
    %v128 = vunpack.c.l.b16 %v65
    %v129 = vunpack.c.l.b16 %v66
    %v130 = vunpack.c.l.b16 %v67
    %v131 = vunpack.c.l.b16 %v68
    %v132 = vunpack.c.l.b16 %v69
    %v133 = vunpack.c.l.b16 %v70
    %v134 = vunpack.c.l.b16 %v71
    %v135 = vunpack.c.l.b16 %v72
    %v136 = vpack.c.b16 %v121, %v120
    %v137 = vpack.c.b16 %v123, %v122
    %v138 = vpack.c.b16 %v125, %v124
    %v139 = vpack.c.b16 %v127, %v126
    %v140 = vpack.c.b16 %v129, %v128
    %v141 = vpack.c.b16 %v131, %v130
    %v142 = vpack.c.b16 %v133, %v132
    %v143 = vpack.c.b16 %v135, %v134
    %152 = vmatprep.subr.bf16.mxu0 0
    %153 = vmatpush1.bf16.msra.mxu0 %v143
    %154 = vmatprep.subr.bf16.mxu0 0
    %155 = vmatpush1.bf16.msra.mxu0 %v142
    %156 = vmatprep.subr.bf16.mxu0 0
    %157 = vmatpush1.bf16.msra.mxu0 %v141
    %158 = vmatprep.subr.bf16.mxu0 0
    %159 = vmatpush1.bf16.msra.mxu0 %v140
    %160 = vmatprep.subr.bf16.mxu0 0
    %161 = vmatpush1.bf16.msra.mxu0 %v139
    %162 = vmatprep.subr.bf16.mxu0 0
    %163 = vmatpush1.bf16.msra.mxu0 %v138
    %164 = vmatprep.subr.bf16.mxu0 0
    %165 = vmatpush1.bf16.msra.mxu0 %v137
    %166 = vmatprep.subr.bf16.mxu0 0
    %167 = vmatpush1.bf16.msra.mxu0 %v136
    %168 = vmatprep.subr.bf16.mxu0 0
    %169 = vmatpush2.bf16.msra.mxu0 0
    %170 = vmatprep.subr.bf16.mxu0 0
    %171 = vmatpush2.bf16.msra.mxu0 0
    %172 = vmatprep.subr.bf16.mxu0 0
    %173 = vmatpush2.bf16.msra.mxu0 0
    %174 = vmatprep.subr.bf16.mxu0 0
    %175 = vmatpush2.bf16.msra.mxu0 0
    %176 = vmatprep.subr.bf16.mxu0 0
    %177 = vmatpush2.bf16.msra.mxu0 0
    %178 = vmatprep.subr.bf16.mxu0 0
    %179 = vmatpush2.bf16.msra.mxu0 0
    %180 = vmatprep.subr.bf16.mxu0 0
    %181 = vmatpush2.bf16.msra.mxu0 0
    %182 = vmatprep.subr.bf16.mxu0 0
    %183 = vmatpush2.bf16.msra.mxu0 0
    %184 = vmatprep.mubr.bf16.mxu0 0
    %185 = vmatmul.mubr.bf16.gmra.mxu0 %v96
    %v186 = vpop.f32.mrf.mxu0
    %v187 = vadd.f32 %v78, %v186
    %v188 = vpop.f32.mrf.mxu0
    %v189 = vpop.f32.mrf.mxu0
    %v190 = vadd.f32 %v78, %v189
    %v191 = vpop.f32.mrf.mxu0
    %192 = vmatprep.mubr.bf16.mxu0 0
    %193 = vmatmul.mubr.bf16.gmra.mxu0 %v97
    %v194 = vpop.f32.mrf.mxu0
    %v195 = vadd.f32 %v78, %v194
    %v196 = vpop.f32.mrf.mxu0
    %v197 = vpop.f32.mrf.mxu0
    %v198 = vadd.f32 %v78, %v197
    %v199 = vpop.f32.mrf.mxu0
    %200 = vmatprep.mubr.bf16.mxu0 0
    %201 = vmatmul.mubr.bf16.gmra.mxu0 %v98
    %v202 = vpop.f32.mrf.mxu0
    %v203 = vadd.f32 %v78, %v202
    %v204 = vpop.f32.mrf.mxu0
    %v205 = vpop.f32.mrf.mxu0
    %v206 = vadd.f32 %v78, %v205
    %v207 = vpop.f32.mrf.mxu0
    %208 = vmatprep.mubr.bf16.mxu0 0
    %209 = vmatmul.mubr.bf16.gmra.mxu0 %v99
    %v210 = vpop.f32.mrf.mxu0
    %v211 = vadd.f32 %v78, %v210
    %v212 = vpop.f32.mrf.mxu0
    %v213 = vpop.f32.mrf.mxu0
    %v214 = vadd.f32 %v78, %v213
    %v215 = vpop.f32.mrf.mxu0
    %216 = vdwg.mxu0
    %v217 = vpack.c.bf16 %v190, %v187
    %v218 = vpack.c.bf16 %v198, %v195
    %v219 = vpack.c.bf16 %v206, %v203
    %v220 = vpack.c.bf16 %v214, %v211
    %v221 = vld [vmem:[#allocation4] sm:$0xff]
    %v222 = vld [vmem:[#allocation4 + $0x8] sm:$0xf]
    %v223 = vld [vmem:[#allocation4 + $0xc] sm:$0xff]
    %v224 = vld [vmem:[#allocation4 + $0x14] sm:$0xf]
    %v225 = vld [vmem:[#allocation4 + $0x18] sm:$0xff]
    %v226 = vld [vmem:[#allocation4 + $0x20] sm:$0xf]
    %v227 = vld [vmem:[#allocation4 + $0x24] sm:$0xff]
    %v228 = vld [vmem:[#allocation4 + $0x2c] sm:$0xf]
    %v229 = vld [vmem:[#allocation4 + $0x30] sm:$0xff]
    %v230 = vld [vmem:[#allocation4 + $0x38] sm:$0xf]
    %v231 = vld [vmem:[#allocation4 + $0x3c] sm:$0xff]
    %v232 = vld [vmem:[#allocation4 + $0x44] sm:$0xf]
    %v233 = vld [vmem:[#allocation4 + $0x48] sm:$0xff]
    %v234 = vld [vmem:[#allocation4 + $0x50] sm:$0xf]
    %v235 = vld [vmem:[#allocation4 + $0x54] sm:$0xff]
    %v236 = vld [vmem:[#allocation4 + $0x5c] sm:$0xf]
    %v237 = vld [vmem:[#allocation4 + $0x60] sm:$0xff]
    %v238 = vld [vmem:[#allocation4 + $0x68] sm:$0xf]
    %v239 = vld [vmem:[#allocation4 + $0x6c] sm:$0xff]
    %v240 = vld [vmem:[#allocation4 + $0x74] sm:$0xf]
    %v241 = vld [vmem:[#allocation4 + $0x78] sm:$0xff]
    %v242 = vld [vmem:[#allocation4 + $0x80] sm:$0xf]
    %v243 = vld [vmem:[#allocation4 + $0x84] sm:$0xff]
    %v244 = vld [vmem:[#allocation4 + $0x8c] sm:$0xf]
    %v245 = vld [vmem:[#allocation4 + $0x90] sm:$0xff]
    %v246 = vld [vmem:[#allocation4 + $0x98] sm:$0xf]
    %v247 = vld [vmem:[#allocation4 + $0x9c] sm:$0xff]
    %v248 = vld [vmem:[#allocation4 + $0xa4] sm:$0xf]
    %v249 = vld [vmem:[#allocation4 + $0xa8] sm:$0xff]
    %v250 = vld [vmem:[#allocation4 + $0xb0] sm:$0xf]
    %v251 = vld [vmem:[#allocation4 + $0xb4] sm:$0xff]
    %v252 = vld [vmem:[#allocation4 + $0xbc] sm:$0xf]
    %v253 = vld [vmem:[%s4] sm:$0x7]
    %v255 = vlaneseq
    %v256 = vshrl.u32 %v255, 7
    %v257 = vsub.s32 0, %v256
    %v258 = vrot.slane %v253, %v257
    %v259 = vlaneseq
    %v260 = vshrl.u32 %v259, 7
    %v261 = vsub.s32 1, %v260
    %v262 = vrot.slane %v253, %v261
    %v263 = vlaneseq
    %v264 = vshrl.u32 %v263, 7
    %v265 = vsub.s32 2, %v264
    %v266 = vrot.slane %v253, %v265
    %v302 = vunpack.c.l.b16 %v221
    %v303 = vunpack.c.h.b16 %v221
    %v304 = vunpack.c.l.b16 %v222
    %v305 = vunpack.c.l.b16 %v223
    %v306 = vunpack.c.h.b16 %v223
    %v307 = vunpack.c.l.b16 %v224
    %v308 = vunpack.c.l.b16 %v225
    %v309 = vunpack.c.h.b16 %v225
    %v310 = vunpack.c.l.b16 %v226
    %v311 = vunpack.c.l.b16 %v227
    %v312 = vunpack.c.h.b16 %v227
    %v313 = vunpack.c.l.b16 %v228
    %v314 = vunpack.c.l.b16 %v229
    %v315 = vunpack.c.h.b16 %v229
    %v316 = vunpack.c.l.b16 %v230
    %v317 = vunpack.c.l.b16 %v231
    %v318 = vunpack.c.h.b16 %v231
    %v319 = vunpack.c.l.b16 %v232
    %v320 = vunpack.c.l.b16 %v233
    %v321 = vunpack.c.h.b16 %v233
    %v322 = vunpack.c.l.b16 %v234
    %v323 = vunpack.c.l.b16 %v235
    %v324 = vunpack.c.h.b16 %v235
    %v325 = vunpack.c.l.b16 %v236
    %v326 = vunpack.c.l.b16 %v237
    %v327 = vunpack.c.h.b16 %v237
    %v328 = vunpack.c.l.b16 %v238
    %v329 = vunpack.c.l.b16 %v239
    %v330 = vunpack.c.h.b16 %v239
    %v331 = vunpack.c.l.b16 %v240
    %v332 = vunpack.c.l.b16 %v241
    %v333 = vunpack.c.h.b16 %v241
    %v334 = vunpack.c.l.b16 %v242
    %v335 = vunpack.c.l.b16 %v243
    %v336 = vunpack.c.h.b16 %v243
    %v337 = vunpack.c.l.b16 %v244
    %v338 = vunpack.c.l.b16 %v245
    %v339 = vunpack.c.h.b16 %v245
    %v340 = vunpack.c.l.b16 %v246
    %v341 = vunpack.c.l.b16 %v247
    %v342 = vunpack.c.h.b16 %v247
    %v343 = vunpack.c.l.b16 %v248
    %v344 = vunpack.c.l.b16 %v249
    %v345 = vunpack.c.h.b16 %v249
    %v346 = vunpack.c.l.b16 %v250
    %v347 = vunpack.c.l.b16 %v251
    %v348 = vunpack.c.h.b16 %v251
    %v349 = vunpack.c.l.b16 %v252
    %v350 = vpack.c.b16 %v305, %v302
    %v351 = vpack.c.b16 %v306, %v303
    %v352 = vpack.c.b16 %v307, %v304
    %v353 = vpack.c.b16 %v311, %v308
    %v354 = vpack.c.b16 %v312, %v309
    %v355 = vpack.c.b16 %v313, %v310
    %v356 = vpack.c.b16 %v317, %v314
    %v357 = vpack.c.b16 %v318, %v315
    %v358 = vpack.c.b16 %v319, %v316
    %v359 = vpack.c.b16 %v323, %v320
    %v360 = vpack.c.b16 %v324, %v321
    %v361 = vpack.c.b16 %v325, %v322
    %v362 = vpack.c.b16 %v329, %v326
    %v363 = vpack.c.b16 %v330, %v327
    %v364 = vpack.c.b16 %v331, %v328
    %v365 = vpack.c.b16 %v335, %v332
    %v366 = vpack.c.b16 %v336, %v333
    %v367 = vpack.c.b16 %v337, %v334
    %v368 = vpack.c.b16 %v341, %v338
    %v369 = vpack.c.b16 %v342, %v339
    %v370 = vpack.c.b16 %v343, %v340
    %v371 = vpack.c.b16 %v347, %v344
    %v372 = vpack.c.b16 %v348, %v345
    %v373 = vpack.c.b16 %v349, %v346
    %398 = vmatprep.subr.bf16.mxu0 %v372
    %399 = vmatpush1.bf16.msra.mxu0 %v371
    %400 = vmatprep.subr.bf16.mxu0 %v369
    %401 = vmatpush1.bf16.msra.mxu0 %v368
    %402 = vmatprep.subr.bf16.mxu0 %v366
    %403 = vmatpush1.bf16.msra.mxu0 %v365
    %404 = vmatprep.subr.bf16.mxu0 %v363
    %405 = vmatpush1.bf16.msra.mxu0 %v362
    %406 = vmatprep.subr.bf16.mxu0 %v360
    %407 = vmatpush1.bf16.msra.mxu0 %v359
    %408 = vmatprep.subr.bf16.mxu0 %v357
    %409 = vmatpush1.bf16.msra.mxu0 %v356
    %410 = vmatprep.subr.bf16.mxu0 %v354
    %411 = vmatpush1.bf16.msra.mxu0 %v353
    %412 = vmatprep.subr.bf16.mxu0 %v351
    %413 = vmatpush1.bf16.msra.mxu0 %v350
    %414 = vmatprep.subr.bf16.mxu0 0
    %415 = vmatpush2.bf16.msra.mxu0 0
    %416 = vmatprep.subr.bf16.mxu0 0
    %417 = vmatpush2.bf16.msra.mxu0 0
    %418 = vmatprep.subr.bf16.mxu0 0
    %419 = vmatpush2.bf16.msra.mxu0 0
    %420 = vmatprep.subr.bf16.mxu0 0
    %421 = vmatpush2.bf16.msra.mxu0 0
    %422 = vmatprep.subr.bf16.mxu0 0
    %423 = vmatpush2.bf16.msra.mxu0 0
    %424 = vmatprep.subr.bf16.mxu0 0
    %425 = vmatpush2.bf16.msra.mxu0 0
    %426 = vmatprep.subr.bf16.mxu0 0
    %427 = vmatpush2.bf16.msra.mxu0 0
    %428 = vmatprep.subr.bf16.mxu0 0
    %429 = vmatpush2.bf16.msra.mxu0 0
    %430 = vmatprep.mubr.bf16.mxu0 0
    %431 = vmatmul.mubr.bf16.gmra.mxu0 %v217
    %v432 = vpop.f32.mrf.mxu0
    %v433 = vadd.f32 %v258, %v432
    %v434 = vpop.f32.mrf.mxu0
    %v435 = vadd.f32 %v262, %v434
    %v436 = vpop.f32.mrf.mxu0
    %v437 = vadd.f32 %v258, %v436
    %v438 = vpop.f32.mrf.mxu0
    %v439 = vadd.f32 %v262, %v438
    %440 = vmatprep.mubr.bf16.mxu0 0
    %441 = vmatmul.mubr.bf16.gmra.mxu0 %v218
    %v442 = vpop.f32.mrf.mxu0
    %v443 = vadd.f32 %v258, %v442
    %v444 = vpop.f32.mrf.mxu0
    %v445 = vadd.f32 %v262, %v444
    %v446 = vpop.f32.mrf.mxu0
    %v447 = vadd.f32 %v258, %v446
    %v448 = vpop.f32.mrf.mxu0
    %v449 = vadd.f32 %v262, %v448
    %450 = vmatprep.mubr.bf16.mxu0 0
    %451 = vmatmul.mubr.bf16.gmra.mxu0 %v219
    %v452 = vpop.f32.mrf.mxu0
    %v453 = vadd.f32 %v258, %v452
    %v454 = vpop.f32.mrf.mxu0
    %v455 = vadd.f32 %v262, %v454
    %v456 = vpop.f32.mrf.mxu0
    %v457 = vadd.f32 %v258, %v456
    %v458 = vpop.f32.mrf.mxu0
    %v459 = vadd.f32 %v262, %v458
    %460 = vmatprep.mubr.bf16.mxu0 0
    %461 = vmatmul.mubr.bf16.gmra.mxu0 %v220
    %v462 = vpop.f32.mrf.mxu0
    %v463 = vadd.f32 %v258, %v462
    %v464 = vpop.f32.mrf.mxu0
    %v465 = vadd.f32 %v262, %v464
    %v466 = vpop.f32.mrf.mxu0
    %v467 = vadd.f32 %v258, %v466
    %v468 = vpop.f32.mrf.mxu0
    %v469 = vadd.f32 %v262, %v468
    %470 = vdwg.mxu0
    %471 = vmatprep.subr.bf16.mxu0 0
    %472 = vmatpush1.bf16.msra.mxu0 %v373
    %473 = vmatprep.subr.bf16.mxu0 0
    %474 = vmatpush1.bf16.msra.mxu0 %v370
    %475 = vmatprep.subr.bf16.mxu0 0
    %476 = vmatpush1.bf16.msra.mxu0 %v367
    %477 = vmatprep.subr.bf16.mxu0 0
    %478 = vmatpush1.bf16.msra.mxu0 %v364
    %479 = vmatprep.subr.bf16.mxu0 0
    %480 = vmatpush1.bf16.msra.mxu0 %v361
    %481 = vmatprep.subr.bf16.mxu0 0
    %482 = vmatpush1.bf16.msra.mxu0 %v358
    %483 = vmatprep.subr.bf16.mxu0 0
    %484 = vmatpush1.bf16.msra.mxu0 %v355
    %485 = vmatprep.subr.bf16.mxu0 0
    %486 = vmatpush1.bf16.msra.mxu0 %v352
    %487 = vmatprep.subr.bf16.mxu0 0
    %488 = vmatpush2.bf16.msra.mxu0 0
    %489 = vmatprep.subr.bf16.mxu0 0
    %490 = vmatpush2.bf16.msra.mxu0 0
    %491 = vmatprep.subr.bf16.mxu0 0
    %492 = vmatpush2.bf16.msra.mxu0 0
    %493 = vmatprep.subr.bf16.mxu0 0
    %494 = vmatpush2.bf16.msra.mxu0 0
    %495 = vmatprep.subr.bf16.mxu0 0
    %496 = vmatpush2.bf16.msra.mxu0 0
    %497 = vmatprep.subr.bf16.mxu0 0
    %498 = vmatpush2.bf16.msra.mxu0 0
    %499 = vmatprep.subr.bf16.mxu0 0
    %500 = vmatpush2.bf16.msra.mxu0 0
    %501 = vmatprep.subr.bf16.mxu0 0
    %502 = vmatpush2.bf16.msra.mxu0 0
    %503 = vmatprep.mubr.bf16.mxu0 0
    %504 = vmatmul.mubr.bf16.gmra.mxu0 %v217
    %v505 = vpop.f32.mrf.mxu0
    %v506 = vadd.f32 %v266, %v505
    %v507 = vpop.f32.mrf.mxu0
    %v508 = vpop.f32.mrf.mxu0
    %v509 = vadd.f32 %v266, %v508
    %v510 = vpop.f32.mrf.mxu0
    %511 = vmatprep.mubr.bf16.mxu0 0
    %512 = vmatmul.mubr.bf16.gmra.mxu0 %v218
    %v513 = vpop.f32.mrf.mxu0
    %v514 = vadd.f32 %v266, %v513
    %v515 = vpop.f32.mrf.mxu0
    %v516 = vpop.f32.mrf.mxu0
    %v517 = vadd.f32 %v266, %v516
    %v518 = vpop.f32.mrf.mxu0
    %519 = vmatprep.mubr.bf16.mxu0 0
    %520 = vmatmul.mubr.bf16.gmra.mxu0 %v219
    %v521 = vpop.f32.mrf.mxu0
    %v522 = vadd.f32 %v266, %v521
    %v523 = vpop.f32.mrf.mxu0
    %v524 = vpop.f32.mrf.mxu0
    %v525 = vadd.f32 %v266, %v524
    %v526 = vpop.f32.mrf.mxu0
    %527 = vmatprep.mubr.bf16.mxu0 0
    %528 = vmatmul.mubr.bf16.gmra.mxu0 %v220
    %v529 = vpop.f32.mrf.mxu0
    %v530 = vadd.f32 %v266, %v529
    %v531 = vpop.f32.mrf.mxu0
    %v532 = vpop.f32.mrf.mxu0
    %v533 = vadd.f32 %v266, %v532
    %v534 = vpop.f32.mrf.mxu0
    %535 = vdwg.mxu0
    %536 = vst [vmem:[%s5] sm:$0xff] %v433
    %537 = vst [vmem:[%s5 + $0x8] sm:$0xff] %v435
    %538 = vst [vmem:[%s5 + $0x10] sm:$0xff] %v506
    %539 = vst [vmem:[%s5 + $0x18] sm:$0xff] %v437
    %540 = vst [vmem:[%s5 + $0x20] sm:$0xff] %v439
    %541 = vst [vmem:[%s5 + $0x28] sm:$0xff] %v509
    %542 = vst [vmem:[%s5 + $0x30] sm:$0xff] %v443
    %543 = vst [vmem:[%s5 + $0x38] sm:$0xff] %v445
    %544 = vst [vmem:[%s5 + $0x40] sm:$0xff] %v514
    %545 = vst [vmem:[%s5 + $0x48] sm:$0xff] %v447
    %546 = vst [vmem:[%s5 + $0x50] sm:$0xff] %v449
    %547 = vst [vmem:[%s5 + $0x58] sm:$0xff] %v517
    %548 = vst [vmem:[%s5 + $0x60] sm:$0xff] %v453
    %549 = vst [vmem:[%s5 + $0x68] sm:$0xff] %v455
    %550 = vst [vmem:[%s5 + $0x70] sm:$0xff] %v522
    %551 = vst [vmem:[%s5 + $0x78] sm:$0xff] %v457
    %552 = vst [vmem:[%s5 + $0x80] sm:$0xff] %v459
    %553 = vst [vmem:[%s5 + $0x88] sm:$0xff] %v525
    %554 = vst [vmem:[%s5 + $0x90] sm:$0xff] %v463
    %555 = vst [vmem:[%s5 + $0x98] sm:$0xff] %v465
    %556 = vst [vmem:[%s5 + $0xa0] sm:$0xff] %v530
    %557 = vst [vmem:[%s5 + $0xa8] sm:$0xff] %v467
    %558 = vst [vmem:[%s5 + $0xb0] sm:$0xff] %v469
    %559 = vst [vmem:[%s5 + $0xb8] sm:$0xff] %v533
    // Predicated region
    $region30: #{model_forward.3} parent=1 // pred_check
      _
    $region31: #{model_forward.3} parent=1 // pred_check_branch
      %561 = sbr.rel (0) target = $region33
    $region32: #{model_forward.3} parent=1 // pred_region
      _
    $region33: #{model_forward.3} parent=1 // pred_fallthru
      _
    // Predicated region
    $region34: #{model_forward.3} parent=1 // pred_check
      _
    $region35: #{model_forward.3} parent=1 // pred_check_branch
      %563 = sbr.rel (0) target = $region37
    $region36: #{model_forward.3} parent=1 // pred_region
      _
    $region37: #{model_forward.3} parent=1 // pred_fallthru
      _
    %564 = vsyncpa [#allocation3], 1
    %565 = vsyncpa [#allocation5], 1

// kernel: model_forward.5
$region0: #{model_forward.5}
  #allocation0 [shape = 'u32[]', space=smem, size = 0x4, offset = 0x4, fixed_abs, tag = 'smem constant byte address 0x4 - core index']
  #allocation1 [shape = 'u32[144,128]{1,0:T(1,128)}', space=vmem, size = 0x12000, scoped, tag = 'internal scratch']
  %s0 = inlined_call_operand.vmem [shape: bf16[64,128], index: 0, kind: input, shape index: {}]
  %s1 = inlined_call_operand.vmem [shape: bf16[128,128], index: 1, kind: input, shape index: {}]
  %s2 = inlined_call_operand.vmem [shape: f32[1,128], index: 2, kind: input, shape index: {}]
  %s3 = inlined_call_operand.vmem [shape: bf16[128,128], index: 3, kind: input, shape index: {}]
  %s4 = inlined_call_operand.vmem [shape: f32[1,128], index: 4, kind: input, shape index: {}]
  %s5 = inlined_call_operand.vmem [shape: bf16[128,128], index: 5, kind: input, shape index: {}]
  %s6 = inlined_call_operand.vmem [shape: f32[1,128], index: 6, kind: input, shape index: {}]
  %s7 = inlined_call_operand.vmem [shape: f32[64,128], index: 7, kind: output, shape index: {}]
  %s8 = sld [smem:[#allocation0]]
  $region38: #{model_forward.5} parent=0
    _
  %s10 = ssub.s32 1, %s8
  %s11 = scalar_select 0, %s10, %s8
  // Predicated region
  $region2: #{model_forward.5} parent=0 // pred_check
    _
  $region3: #{model_forward.5} parent=0 // pred_check_branch
    %13 = sbr.rel (0) target = $region5
  $region4: #{model_forward.5} parent=0 // pred_region
    _
  $region5: #{model_forward.5} parent=0 // pred_fallthru
    _
  // Predicated region
  $region6: #{model_forward.5} parent=0 // pred_check
    _
  $region7: #{model_forward.5} parent=0 // pred_check_branch
    %15 = sbr.rel (0) target = $region9
  $region8: #{model_forward.5} parent=0 // pred_region
    _
  $region9: #{model_forward.5} parent=0 // pred_fallthru
    _
  // Predicated region
  $region10: #{model_forward.5} parent=0 // pred_check
    _
  $region11: #{model_forward.5} parent=0 // pred_check_branch
    %17 = sbr.rel (0) target = $region13
  $region12: #{model_forward.5} parent=0 // pred_region
    _
  $region13: #{model_forward.5} parent=0 // pred_fallthru
    _
  // Predicated region
  $region14: #{model_forward.5} parent=0 // pred_check
    _
  $region15: #{model_forward.5} parent=0 // pred_check_branch
    %19 = sbr.rel (0) target = $region17
  $region16: #{model_forward.5} parent=0 // pred_region
    _
  $region17: #{model_forward.5} parent=0 // pred_fallthru
    _
  // Predicated region
  $region18: #{model_forward.5} parent=0 // pred_check
    _
  $region19: #{model_forward.5} parent=0 // pred_check_branch
    %21 = sbr.rel (0) target = $region21
  $region20: #{model_forward.5} parent=0 // pred_region
    _
  $region21: #{model_forward.5} parent=0 // pred_fallthru
    _
  // Predicated region
  $region22: #{model_forward.5} parent=0 // pred_check
    _
  $region23: #{model_forward.5} parent=0 // pred_check_branch
    %23 = sbr.rel (0) target = $region25
  $region24: #{model_forward.5} parent=0 // pred_region
    _
  $region25: #{model_forward.5} parent=0 // pred_fallthru
    _
  // Predicated region
  $region26: #{model_forward.5} parent=0 // pred_check
    _
  $region27: #{model_forward.5} parent=0 // pred_check_branch
    %25 = sbr.rel (0) target = $region29
  $region28: #{model_forward.5} parent=0 // pred_region
    _
  $region29: #{model_forward.5} parent=0 // pred_fallthru
    _
  %v27 = vld [vmem:[%s0] sm:$0xf]
  %v28 = vld [vmem:[%s0 + $0x4] sm:$0xf]
  %v29 = vld [vmem:[%s0 + $0x8] sm:$0xf]
  %v30 = vld [vmem:[%s0 + $0xc] sm:$0xf]
  %v31 = vld [vmem:[%s0 + $0x10] sm:$0xf]
  %v32 = vld [vmem:[%s0 + $0x14] sm:$0xf]
  %v33 = vld [vmem:[%s0 + $0x18] sm:$0xf]
  %v34 = vld [vmem:[%s0 + $0x1c] sm:$0xf]
  %v35 = vld [vmem:[%s1] sm:$0xf]
  %v36 = vld [vmem:[%s1 + $0x4] sm:$0xf]
  %v37 = vld [vmem:[%s1 + $0x8] sm:$0xf]
  %v38 = vld [vmem:[%s1 + $0xc] sm:$0xf]
  %v39 = vld [vmem:[%s1 + $0x10] sm:$0xf]
  %v40 = vld [vmem:[%s1 + $0x14] sm:$0xf]
  %v41 = vld [vmem:[%s1 + $0x18] sm:$0xf]
  %v42 = vld [vmem:[%s1 + $0x1c] sm:$0xf]
  %v43 = vld [vmem:[%s1 + $0x20] sm:$0xf]
  %v44 = vld [vmem:[%s1 + $0x24] sm:$0xf]
  %v45 = vld [vmem:[%s1 + $0x28] sm:$0xf]
  %v46 = vld [vmem:[%s1 + $0x2c] sm:$0xf]
  %v47 = vld [vmem:[%s1 + $0x30] sm:$0xf]
  %v48 = vld [vmem:[%s1 + $0x34] sm:$0xf]
  %v49 = vld [vmem:[%s1 + $0x38] sm:$0xf]
  %v50 = vld [vmem:[%s1 + $0x3c] sm:$0xf]
  %v51 = vld [vmem:[%s2] sm:$0x1]
  %v53 = vlaneseq
  %v54 = vshrl.u32 %v53, 7
  %v55 = vsub.s32 0, %v54
  %v56 = vrot.slane %v51, %v55
  %v66 = vunpack.c.l.b16 %v27
  %v67 = vunpack.c.l.b16 %v28
  %v68 = vunpack.c.l.b16 %v29
  %v69 = vunpack.c.l.b16 %v30
  %v70 = vunpack.c.l.b16 %v31
  %v71 = vunpack.c.l.b16 %v32
  %v72 = vunpack.c.l.b16 %v33
  %v73 = vunpack.c.l.b16 %v34
  %v74 = vpack.c.b16 %v67, %v66
  %v75 = vpack.c.b16 %v69, %v68
  %v76 = vpack.c.b16 %v71, %v70
  %v77 = vpack.c.b16 %v73, %v72
  %v98 = vunpack.c.l.b16 %v35
  %v99 = vunpack.c.l.b16 %v36
  %v100 = vunpack.c.l.b16 %v37
  %v101 = vunpack.c.l.b16 %v38
  %v102 = vunpack.c.l.b16 %v39
  %v103 = vunpack.c.l.b16 %v40
  %v104 = vunpack.c.l.b16 %v41
  %v105 = vunpack.c.l.b16 %v42
  %v106 = vunpack.c.l.b16 %v43
  %v107 = vunpack.c.l.b16 %v44
  %v108 = vunpack.c.l.b16 %v45
  %v109 = vunpack.c.l.b16 %v46
  %v110 = vunpack.c.l.b16 %v47
  %v111 = vunpack.c.l.b16 %v48
  %v112 = vunpack.c.l.b16 %v49
  %v113 = vunpack.c.l.b16 %v50
  %v114 = vpack.c.b16 %v99, %v98
  %v115 = vpack.c.b16 %v101, %v100
  %v116 = vpack.c.b16 %v103, %v102
  %v117 = vpack.c.b16 %v105, %v104
  %v118 = vpack.c.b16 %v107, %v106
  %v119 = vpack.c.b16 %v109, %v108
  %v120 = vpack.c.b16 %v111, %v110
  %v121 = vpack.c.b16 %v113, %v112
  %130 = vmatprep.subr.bf16.mxu0 0
  %131 = vmatpush1.bf16.msra.mxu0 %v121
  %132 = vmatprep.subr.bf16.mxu0 0
  %133 = vmatpush1.bf16.msra.mxu0 %v120
  %134 = vmatprep.subr.bf16.mxu0 0
  %135 = vmatpush1.bf16.msra.mxu0 %v119
  %136 = vmatprep.subr.bf16.mxu0 0
  %137 = vmatpush1.bf16.msra.mxu0 %v118
  %138 = vmatprep.subr.bf16.mxu0 0
  %139 = vmatpush1.bf16.msra.mxu0 %v117
  %140 = vmatprep.subr.bf16.mxu0 0
  %141 = vmatpush1.bf16.msra.mxu0 %v116
  %142 = vmatprep.subr.bf16.mxu0 0
  %143 = vmatpush1.bf16.msra.mxu0 %v115
  %144 = vmatprep.subr.bf16.mxu0 0
  %145 = vmatpush1.bf16.msra.mxu0 %v114
  %146 = vmatprep.subr.bf16.mxu0 0
  %147 = vmatpush2.bf16.msra.mxu0 0
  %148 = vmatprep.subr.bf16.mxu0 0
  %149 = vmatpush2.bf16.msra.mxu0 0
  %150 = vmatprep.subr.bf16.mxu0 0
  %151 = vmatpush2.bf16.msra.mxu0 0
  %152 = vmatprep.subr.bf16.mxu0 0
  %153 = vmatpush2.bf16.msra.mxu0 0
  %154 = vmatprep.subr.bf16.mxu0 0
  %155 = vmatpush2.bf16.msra.mxu0 0
  %156 = vmatprep.subr.bf16.mxu0 0
  %157 = vmatpush2.bf16.msra.mxu0 0
  %158 = vmatprep.subr.bf16.mxu0 0
  %159 = vmatpush2.bf16.msra.mxu0 0
  %160 = vmatprep.subr.bf16.mxu0 0
  %161 = vmatpush2.bf16.msra.mxu0 0
  %162 = vmatprep.mubr.bf16.mxu0 0
  %163 = vmatmul.mubr.bf16.gmra.mxu0 %v74
  %v164 = vpop.f32.mrf.mxu0
  %v165 = vadd.f32 %v56, %v164
  %v166 = vpop.f32.mrf.mxu0
  %v167 = vpop.f32.mrf.mxu0
  %v168 = vadd.f32 %v56, %v167
  %v169 = vpop.f32.mrf.mxu0
  %170 = vmatprep.mubr.bf16.mxu0 0
  %171 = vmatmul.mubr.bf16.gmra.mxu0 %v75
  %v172 = vpop.f32.mrf.mxu0
  %v173 = vadd.f32 %v56, %v172
  %v174 = vpop.f32.mrf.mxu0
  %v175 = vpop.f32.mrf.mxu0
  %v176 = vadd.f32 %v56, %v175
  %v177 = vpop.f32.mrf.mxu0
  %178 = vmatprep.mubr.bf16.mxu0 0
  %179 = vmatmul.mubr.bf16.gmra.mxu0 %v76
  %v180 = vpop.f32.mrf.mxu0
  %v181 = vadd.f32 %v56, %v180
  %v182 = vpop.f32.mrf.mxu0
  %v183 = vpop.f32.mrf.mxu0
  %v184 = vadd.f32 %v56, %v183
  %v185 = vpop.f32.mrf.mxu0
  %186 = vmatprep.mubr.bf16.mxu0 0
  %187 = vmatmul.mubr.bf16.gmra.mxu0 %v77
  %v188 = vpop.f32.mrf.mxu0
  %v189 = vadd.f32 %v56, %v188
  %v190 = vpop.f32.mrf.mxu0
  %v191 = vpop.f32.mrf.mxu0
  %v192 = vadd.f32 %v56, %v191
  %v193 = vpop.f32.mrf.mxu0
  %194 = vdwg.mxu0
  %v195 = vmax.f32 %v165, 0.0
  %v196 = vmax.f32 %v168, 0.0
  %v197 = vmax.f32 %v173, 0.0
  %v198 = vmax.f32 %v176, 0.0
  %v199 = vmax.f32 %v181, 0.0
  %v200 = vmax.f32 %v184, 0.0
  %v201 = vmax.f32 %v189, 0.0
  %v202 = vmax.f32 %v192, 0.0
  %v203 = vpack.c.bf16 %v196, %v195
  %v204 = vpack.c.bf16 %v198, %v197
  %v205 = vpack.c.bf16 %v200, %v199
  %v206 = vpack.c.bf16 %v202, %v201
  %v207 = vld [vmem:[%s3] sm:$0xf]
  %v208 = vld [vmem:[%s3 + $0x4] sm:$0xf]
  %v209 = vld [vmem:[%s3 + $0x8] sm:$0xf]
  %v210 = vld [vmem:[%s3 + $0xc] sm:$0xf]
  %v211 = vld [vmem:[%s3 + $0x10] sm:$0xf]
  %v212 = vld [vmem:[%s3 + $0x14] sm:$0xf]
  %v213 = vld [vmem:[%s3 + $0x18] sm:$0xf]
  %v214 = vld [vmem:[%s3 + $0x1c] sm:$0xf]
  %v215 = vld [vmem:[%s3 + $0x20] sm:$0xf]
  %v216 = vld [vmem:[%s3 + $0x24] sm:$0xf]
  %v217 = vld [vmem:[%s3 + $0x28] sm:$0xf]
  %v218 = vld [vmem:[%s3 + $0x2c] sm:$0xf]
  %v219 = vld [vmem:[%s3 + $0x30] sm:$0xf]
  %v220 = vld [vmem:[%s3 + $0x34] sm:$0xf]
  %v221 = vld [vmem:[%s3 + $0x38] sm:$0xf]
  %v222 = vld [vmem:[%s3 + $0x3c] sm:$0xf]
  %v223 = vld [vmem:[%s4] sm:$0x1]
  %v225 = vlaneseq
  %v226 = vshrl.u32 %v225, 7
  %v227 = vsub.s32 0, %v226
  %v228 = vrot.slane %v223, %v227
  %v246 = vunpack.c.l.b16 %v207
  %v247 = vunpack.c.l.b16 %v208
  %v248 = vunpack.c.l.b16 %v209
  %v249 = vunpack.c.l.b16 %v210
  %v250 = vunpack.c.l.b16 %v211
  %v251 = vunpack.c.l.b16 %v212
  %v252 = vunpack.c.l.b16 %v213
  %v253 = vunpack.c.l.b16 %v214
  %v254 = vunpack.c.l.b16 %v215
  %v255 = vunpack.c.l.b16 %v216
  %v256 = vunpack.c.l.b16 %v217
  %v257 = vunpack.c.l.b16 %v218
  %v258 = vunpack.c.l.b16 %v219
  %v259 = vunpack.c.l.b16 %v220
  %v260 = vunpack.c.l.b16 %v221
  %v261 = vunpack.c.l.b16 %v222
  %v262 = vpack.c.b16 %v247, %v246
  %v263 = vpack.c.b16 %v249, %v248
  %v264 = vpack.c.b16 %v251, %v250
  %v265 = vpack.c.b16 %v253, %v252
  %v266 = vpack.c.b16 %v255, %v254
  %v267 = vpack.c.b16 %v257, %v256
  %v268 = vpack.c.b16 %v259, %v258
  %v269 = vpack.c.b16 %v261, %v260
  %278 = vmatprep.subr.bf16.mxu0 0
  %279 = vmatpush1.bf16.msra.mxu0 %v269
  %280 = vmatprep.subr.bf16.mxu0 0
  %281 = vmatpush1.bf16.msra.mxu0 %v268
  %282 = vmatprep.subr.bf16.mxu0 0
  %283 = vmatpush1.bf16.msra.mxu0 %v267
  %284 = vmatprep.subr.bf16.mxu0 0
  %285 = vmatpush1.bf16.msra.mxu0 %v266
  %286 = vmatprep.subr.bf16.mxu0 0
  %287 = vmatpush1.bf16.msra.mxu0 %v265
  %288 = vmatprep.subr.bf16.mxu0 0
  %289 = vmatpush1.bf16.msra.mxu0 %v264
  %290 = vmatprep.subr.bf16.mxu0 0
  %291 = vmatpush1.bf16.msra.mxu0 %v263
  %292 = vmatprep.subr.bf16.mxu0 0
  %293 = vmatpush1.bf16.msra.mxu0 %v262
  %294 = vmatprep.subr.bf16.mxu0 0
  %295 = vmatpush2.bf16.msra.mxu0 0
  %296 = vmatprep.subr.bf16.mxu0 0
  %297 = vmatpush2.bf16.msra.mxu0 0
  %298 = vmatprep.subr.bf16.mxu0 0
  %299 = vmatpush2.bf16.msra.mxu0 0
  %300 = vmatprep.subr.bf16.mxu0 0
  %301 = vmatpush2.bf16.msra.mxu0 0
  %302 = vmatprep.subr.bf16.mxu0 0
  %303 = vmatpush2.bf16.msra.mxu0 0
  %304 = vmatprep.subr.bf16.mxu0 0
  %305 = vmatpush2.bf16.msra.mxu0 0
  %306 = vmatprep.subr.bf16.mxu0 0
  %307 = vmatpush2.bf16.msra.mxu0 0
  %308 = vmatprep.subr.bf16.mxu0 0
  %309 = vmatpush2.bf16.msra.mxu0 0
  %310 = vmatprep.mubr.bf16.mxu0 0
  %311 = vmatmul.mubr.bf16.gmra.mxu0 %v203
  %v312 = vpop.f32.mrf.mxu0
  %v313 = vadd.f32 %v228, %v312
  %v314 = vpop.f32.mrf.mxu0
  %v315 = vpop.f32.mrf.mxu0
  %v316 = vadd.f32 %v228, %v315
  %v317 = vpop.f32.mrf.mxu0
  %318 = vmatprep.mubr.bf16.mxu0 0
  %319 = vmatmul.mubr.bf16.gmra.mxu0 %v204
  %v320 = vpop.f32.mrf.mxu0
  %v321 = vadd.f32 %v228, %v320
  %v322 = vpop.f32.mrf.mxu0
  %v323 = vpop.f32.mrf.mxu0
  %v324 = vadd.f32 %v228, %v323
  %v325 = vpop.f32.mrf.mxu0
  %326 = vmatprep.mubr.bf16.mxu0 0
  %327 = vmatmul.mubr.bf16.gmra.mxu0 %v205
  %v328 = vpop.f32.mrf.mxu0
  %v329 = vadd.f32 %v228, %v328
  %v330 = vpop.f32.mrf.mxu0
  %v331 = vpop.f32.mrf.mxu0
  %v332 = vadd.f32 %v228, %v331
  %v333 = vpop.f32.mrf.mxu0
  %334 = vmatprep.mubr.bf16.mxu0 0
  %335 = vmatmul.mubr.bf16.gmra.mxu0 %v206
  %v336 = vpop.f32.mrf.mxu0
  %v337 = vadd.f32 %v228, %v336
  %v338 = vpop.f32.mrf.mxu0
  %v339 = vpop.f32.mrf.mxu0
  %v340 = vadd.f32 %v228, %v339
  %v341 = vpop.f32.mrf.mxu0
  %342 = vdwg.mxu0
  %v343 = vmax.f32 %v313, 0.0
  %v344 = vmax.f32 %v316, 0.0
  %v345 = vmax.f32 %v321, 0.0
  %v346 = vmax.f32 %v324, 0.0
  %v347 = vmax.f32 %v329, 0.0
  %v348 = vmax.f32 %v332, 0.0
  %v349 = vmax.f32 %v337, 0.0
  %v350 = vmax.f32 %v340, 0.0
  %v351 = vpack.c.bf16 %v344, %v343
  %v352 = vpack.c.bf16 %v346, %v345
  %v353 = vpack.c.bf16 %v348, %v347
  %v354 = vpack.c.bf16 %v350, %v349
  %v355 = vld [vmem:[%s5] sm:$0xf]
  %v356 = vld [vmem:[%s5 + $0x4] sm:$0xf]
  %v357 = vld [vmem:[%s5 + $0x8] sm:$0xf]
  %v358 = vld [vmem:[%s5 + $0xc] sm:$0xf]
  %v359 = vld [vmem:[%s5 + $0x10] sm:$0xf]
  %v360 = vld [vmem:[%s5 + $0x14] sm:$0xf]
  %v361 = vld [vmem:[%s5 + $0x18] sm:$0xf]
  %v362 = vld [vmem:[%s5 + $0x1c] sm:$0xf]
  %v363 = vld [vmem:[%s5 + $0x20] sm:$0xf]
  %v364 = vld [vmem:[%s5 + $0x24] sm:$0xf]
  %v365 = vld [vmem:[%s5 + $0x28] sm:$0xf]
  %v366 = vld [vmem:[%s5 + $0x2c] sm:$0xf]
  %v367 = vld [vmem:[%s5 + $0x30] sm:$0xf]
  %v368 = vld [vmem:[%s5 + $0x34] sm:$0xf]
  %v369 = vld [vmem:[%s5 + $0x38] sm:$0xf]
  %v370 = vld [vmem:[%s5 + $0x3c] sm:$0xf]
  %v371 = vld [vmem:[%s6] sm:$0x1]
  %v373 = vlaneseq
  %v374 = vshrl.u32 %v373, 7
  %v375 = vsub.s32 0, %v374
  %v376 = vrot.slane %v371, %v375
  %v394 = vunpack.c.l.b16 %v355
  %v395 = vunpack.c.l.b16 %v356
  %v396 = vunpack.c.l.b16 %v357
  %v397 = vunpack.c.l.b16 %v358
  %v398 = vunpack.c.l.b16 %v359
  %v399 = vunpack.c.l.b16 %v360
  %v400 = vunpack.c.l.b16 %v361
  %v401 = vunpack.c.l.b16 %v362
  %v402 = vunpack.c.l.b16 %v363
  %v403 = vunpack.c.l.b16 %v364
  %v404 = vunpack.c.l.b16 %v365
  %v405 = vunpack.c.l.b16 %v366
  %v406 = vunpack.c.l.b16 %v367
  %v407 = vunpack.c.l.b16 %v368
  %v408 = vunpack.c.l.b16 %v369
  %v409 = vunpack.c.l.b16 %v370
  %v410 = vpack.c.b16 %v395, %v394
  %v411 = vpack.c.b16 %v397, %v396
  %v412 = vpack.c.b16 %v399, %v398
  %v413 = vpack.c.b16 %v401, %v400
  %v414 = vpack.c.b16 %v403, %v402
  %v415 = vpack.c.b16 %v405, %v404
  %v416 = vpack.c.b16 %v407, %v406
  %v417 = vpack.c.b16 %v409, %v408
  %426 = vmatprep.subr.bf16.mxu0 0
  %427 = vmatpush1.bf16.msra.mxu0 %v417
  %428 = vmatprep.subr.bf16.mxu0 0
  %429 = vmatpush1.bf16.msra.mxu0 %v416
  %430 = vmatprep.subr.bf16.mxu0 0
  %431 = vmatpush1.bf16.msra.mxu0 %v415
  %432 = vmatprep.subr.bf16.mxu0 0
  %433 = vmatpush1.bf16.msra.mxu0 %v414
  %434 = vmatprep.subr.bf16.mxu0 0
  %435 = vmatpush1.bf16.msra.mxu0 %v413
  %436 = vmatprep.subr.bf16.mxu0 0
  %437 = vmatpush1.bf16.msra.mxu0 %v412
  %438 = vmatprep.subr.bf16.mxu0 0
  %439 = vmatpush1.bf16.msra.mxu0 %v411
  %440 = vmatprep.subr.bf16.mxu0 0
  %441 = vmatpush1.bf16.msra.mxu0 %v410
  %442 = vmatprep.subr.bf16.mxu0 0
  %443 = vmatpush2.bf16.msra.mxu0 0
  %444 = vmatprep.subr.bf16.mxu0 0
  %445 = vmatpush2.bf16.msra.mxu0 0
  %446 = vmatprep.subr.bf16.mxu0 0
  %447 = vmatpush2.bf16.msra.mxu0 0
  %448 = vmatprep.subr.bf16.mxu0 0
  %449 = vmatpush2.bf16.msra.mxu0 0
  %450 = vmatprep.subr.bf16.mxu0 0
  %451 = vmatpush2.bf16.msra.mxu0 0
  %452 = vmatprep.subr.bf16.mxu0 0
  %453 = vmatpush2.bf16.msra.mxu0 0
  %454 = vmatprep.subr.bf16.mxu0 0
  %455 = vmatpush2.bf16.msra.mxu0 0
  %456 = vmatprep.subr.bf16.mxu0 0
  %457 = vmatpush2.bf16.msra.mxu0 0
  %458 = vmatprep.mubr.bf16.mxu0 0
  %459 = vmatmul.mubr.bf16.gmra.mxu0 %v351
  %v460 = vpop.f32.mrf.mxu0
  %v461 = vadd.f32 %v376, %v460
  %v462 = vpop.f32.mrf.mxu0
  %v463 = vpop.f32.mrf.mxu0
  %v464 = vadd.f32 %v376, %v463
  %v465 = vpop.f32.mrf.mxu0
  %466 = vmatprep.mubr.bf16.mxu0 0
  %467 = vmatmul.mubr.bf16.gmra.mxu0 %v352
  %v468 = vpop.f32.mrf.mxu0
  %v469 = vadd.f32 %v376, %v468
  %v470 = vpop.f32.mrf.mxu0
  %v471 = vpop.f32.mrf.mxu0
  %v472 = vadd.f32 %v376, %v471
  %v473 = vpop.f32.mrf.mxu0
  %474 = vmatprep.mubr.bf16.mxu0 0
  %475 = vmatmul.mubr.bf16.gmra.mxu0 %v353
  %v476 = vpop.f32.mrf.mxu0
  %v477 = vadd.f32 %v376, %v476
  %v478 = vpop.f32.mrf.mxu0
  %v479 = vpop.f32.mrf.mxu0
  %v480 = vadd.f32 %v376, %v479
  %v481 = vpop.f32.mrf.mxu0
  %482 = vmatprep.mubr.bf16.mxu0 0
  %483 = vmatmul.mubr.bf16.gmra.mxu0 %v354
  %v484 = vpop.f32.mrf.mxu0
  %v485 = vadd.f32 %v376, %v484
  %v486 = vpop.f32.mrf.mxu0
  %v487 = vpop.f32.mrf.mxu0
  %v488 = vadd.f32 %v376, %v487
  %v489 = vpop.f32.mrf.mxu0
  %490 = vdwg.mxu0
  %v491 = vxor.u32 %v461, 2147483648
  %v492 = vxor.u32 %v464, 2147483648
  %v493 = vxor.u32 %v469, 2147483648
  %v494 = vxor.u32 %v472, 2147483648
  %v495 = vxor.u32 %v477, 2147483648
  %v496 = vxor.u32 %v480, 2147483648
  %v497 = vxor.u32 %v485, 2147483648
  %v498 = vxor.u32 %v488, 2147483648
  %v499 = vmul.f32 %v491, 1.442695
  %v500 = vpow.pop %v499
  %v501 = vmul.f32 %v492, 1.442695
  %v502 = vpow.pop %v501
  %v503 = vmul.f32 %v493, 1.442695
  %v504 = vpow.pop %v503
  %v505 = vmul.f32 %v494, 1.442695
  %v506 = vpow.pop %v505
  %v507 = vmul.f32 %v495, 1.442695
  %v508 = vpow.pop %v507
  %v509 = vmul.f32 %v496, 1.442695
  %v510 = vpow.pop %v509
  %v511 = vmul.f32 %v497, 1.442695
  %v512 = vpow.pop %v511
  %v513 = vmul.f32 %v498, 1.442695
  %v514 = vpow.pop %v513
  %v515 = vadd.f32 %v500, 1.0
  %v516 = vadd.f32 %v502, 1.0
  %v517 = vadd.f32 %v504, 1.0
  %v518 = vadd.f32 %v506, 1.0
  %v519 = vadd.f32 %v508, 1.0
  %v520 = vadd.f32 %v510, 1.0
  %v521 = vadd.f32 %v512, 1.0
  %v522 = vadd.f32 %v514, 1.0
  %v523 = vrcp.pop %v515
  %v524 = vmul.f32 1.0, %v523
  %v525 = vrcp.pop %v516
  %v526 = vmul.f32 1.0, %v525
  %v527 = vrcp.pop %v517
  %v528 = vmul.f32 1.0, %v527
  %v529 = vrcp.pop %v518
  %v530 = vmul.f32 1.0, %v529
  %v531 = vrcp.pop %v519
  %v532 = vmul.f32 1.0, %v531
  %v533 = vrcp.pop %v520
  %v534 = vmul.f32 1.0, %v533
  %v535 = vrcp.pop %v521
  %v536 = vmul.f32 1.0, %v535
  %v537 = vrcp.pop %v522
  %v538 = vmul.f32 1.0, %v537
  %539 = vst [vmem:[%s7] sm:$0xff] %v524
  %540 = vst [vmem:[%s7 + $0x8] sm:$0xff] %v526
  %541 = vst [vmem:[%s7 + $0x10] sm:$0xff] %v528
  %542 = vst [vmem:[%s7 + $0x18] sm:$0xff] %v530
  %543 = vst [vmem:[%s7 + $0x20] sm:$0xff] %v532
  %544 = vst [vmem:[%s7 + $0x28] sm:$0xff] %v534
  %545 = vst [vmem:[%s7 + $0x30] sm:$0xff] %v536
  %546 = vst [vmem:[%s7 + $0x38] sm:$0xff] %v538
  // Predicated region
  $region30: #{model_forward.5} parent=0 // pred_check
    _
  $region31: #{model_forward.5} parent=0 // pred_check_branch
    %548 = sbr.rel (0) target = $region33
  $region32: #{model_forward.5} parent=0 // pred_region
    _
  $region33: #{model_forward.5} parent=0 // pred_fallthru
    _
  // Predicated region
  $region34: #{model_forward.5} parent=0 // pred_check
    _
  $region35: #{model_forward.5} parent=0 // pred_check_branch
    %550 = sbr.rel (0) target = $region37
  $region36: #{model_forward.5} parent=0 // pred_region
    _
  $region37: #{model_forward.5} parent=0 // pred_fallthru
    _

// kernel: model_forward.4
$region0: #{model_forward.4}
  #allocation0 [shape = 'u32[]', space=smem, size = 0x4, offset = 0x4, fixed_abs, tag = 'smem constant byte address 0x4 - core index']
  #allocation1 [shape = 'u32[144,128]{1,0:T(1,128)}', space=vmem, size = 0x12000, scoped, tag = 'internal scratch']
  #allocation2 [shape = 'f32[8,128]{1,0:T(8,128)}', space=vmem, size = 0x1000, scoped, tag = 'scratch operand']
  #allocation3 [shape = 'f32[8,128]{1,0:T(8,128)}', space=vmem, size = 0x1000, scoped, tag = 'scratch operand']
  %s0 = inlined_call_operand.vmem [shape: f32[8,8,384], index: 0, kind: input, shape index: {}]
  %s1 = inlined_call_operand.vmem [shape: bf16[128,384], index: 1, kind: input, shape index: {}]
  %s2 = inlined_call_operand.vmem [shape: f32[1,384], index: 2, kind: input, shape index: {}]
  %s3 = inlined_call_operand.vmem [shape: bf16[128,384], index: 3, kind: input, shape index: {}]
  %s4 = inlined_call_operand.vmem [shape: f32[1,384], index: 4, kind: input, shape index: {}]
  %s5 = inlined_call_operand.vmem [shape: bf16[128,384], index: 5, kind: input, shape index: {}]
  %s6 = inlined_call_operand.vmem [shape: f32[1,384], index: 6, kind: input, shape index: {}]
  %s7 = inlined_call_operand.vmem [shape: bf16[8,8,128], index: 7, kind: output, shape index: {}]
  %s8 = sld [smem:[#allocation0]]
  $region65: #{model_forward.4} parent=0
    _
  %s10 = ssub.s32 1, %s8
  %s11 = scalar_select 0, %s10, %s8
  loop: start=0, step=1, limit=10
  $region2: #{model_forward.4} parent=0 // loop_pre_header
    _
  $region3: #{model_forward.4} parent=0 // loop_header
    %s13 = sphi 0, %s17
    %p14 = scmp.ge.s32.totalorder %s13, 10
    %s20 = sphi 0, %s32
    %s21 = sphi 0, %s28
    %s22 = sphi 0, %s20
    %s23 = sphi 0, %s21
    %s24 = sphi 0, %s22
    %s25 = sphi 0, %s23
    %s37 = sphi 0, %s39
    %s40 = sphi 0, %s37
    %s41 = sphi 0, %s40
    %s57 = sphi 0, %s41
    %s61 = sphi 0, %s61
    %s63 = sphi 0, %s61
    %s64 = sphi 0, %s63
    %s78 = sphi 0, %s64
    %s82 = sphi 0, %s82
    %s84 = sphi 0, %s82
    %s85 = sphi 0, %s84
    %s99 = sphi 0, %s85
    %s103 = sphi 0, %s103
    %s105 = sphi 0, %s103
    %s106 = sphi 0, %s105
    %s120 = sphi 0, %s106
    %s124 = sphi 0, %s124
    %s126 = sphi 0, %s124
    %s127 = sphi 0, %s126
    %s141 = sphi 0, %s127
    %s145 = sphi 0, %s145
    %s147 = sphi 0, %s145
    %s148 = sphi 0, %s147
    %s162 = sphi 0, %s148
    %s166 = sphi 0, %s166
    %s168 = sphi 0, %s166
    %s169 = sphi 0, %s168
    %s183 = sphi 0, %s169
    %s191 = sphi 0, %s193
    %s194 = sphi 0, %s191
    %s195 = sphi 0, %s194
    %s211 = sphi 0, %s195
  $region4: #{model_forward.4} parent=0 // loop_header_branch
    %16 = sbr.rel (%p14) target = $region8
  $region5: #{model_forward.4} parent=0 // loop_body
    %s18 = ssub.s32 %s13, 1
    %s19 = ssub.s32 %s13, 2
    %s26 = sadd.s32 1, %s21
    %p27 = scmp.ge.s32.totalorder %s26, 8
    %s28 = scalar_select %p27, 0, %s26
    %s29 = sadd.s32 1, %s20
    %s30 = scalar_select %p27, %s29, %s20
    %p31 = scmp.ge.s32.totalorder %s30, 1
    %s32 = scalar_select %p31, 0, %s30
    %s33 = ssub.s32 %s21, %s28
    %s34 = ssub.s32 %s20, %s32
    %s35 = sor.u32 %s33, %s34
    %p36 = scmp.eq.s32.totalorder %s35, 0
    %s38 = sadd.s32 %s37, 1
    %s39 = scalar_select %p36, %s37, %s38
    %p42 = pneg %p36
    %p43 = scmp.eq.s32.totalorder %s13, 7
    %p44 = por %p42, %p43
    %p45 = scmp.ne.s32.totalorder %s37, %s40
    %p46 = scmp.eq.s32.totalorder %s13, 0
    %p47 = por %p45, %p46
    %p48 = scmp.ne.s32.totalorder %s37, %s40
    %p49 = scmp.eq.s32.totalorder %s18, 7
    %p50 = por %p48, %p49
    %p51 = scmp.ne.s32.totalorder %s40, %s41
    %p52 = scmp.eq.s32.totalorder %s18, 0
    %p53 = por %p51, %p52
    %p54 = scmp.ne.s32.totalorder %s40, %s41
    %p55 = scmp.eq.s32.totalorder %s19, 7
    %p56 = por %p54, %p55
    %p58 = scmp.ne.s32.totalorder %s41, %s57
    %p59 = scmp.eq.s32.totalorder %s19, 0
    %p60 = por %p58, %p59
    %s62 = sadd.s32 %s61, 1
    %p65 = scmp.eq.s32.totalorder %s13, 7
    %p66 = scmp.ne.s32.totalorder %s61, %s63
    %p67 = scmp.eq.s32.totalorder %s13, 0
    %p68 = por %p66, %p67
    %p69 = scmp.ne.s32.totalorder %s61, %s63
    %p70 = scmp.eq.s32.totalorder %s18, 7
    %p71 = por %p69, %p70
    %p72 = scmp.ne.s32.totalorder %s63, %s64
    %p73 = scmp.eq.s32.totalorder %s18, 0
    %p74 = por %p72, %p73
    %p75 = scmp.ne.s32.totalorder %s63, %s64
    %p76 = scmp.eq.s32.totalorder %s19, 7
    %p77 = por %p75, %p76
    %p79 = scmp.ne.s32.totalorder %s64, %s78
    %p80 = scmp.eq.s32.totalorder %s19, 0
    %p81 = por %p79, %p80
    %s83 = sadd.s32 %s82, 1
    %p86 = scmp.eq.s32.totalorder %s13, 7
    %p87 = scmp.ne.s32.totalorder %s82, %s84
    %p88 = scmp.eq.s32.totalorder %s13, 0
    %p89 = por %p87, %p88
    %p90 = scmp.ne.s32.totalorder %s82, %s84
    %p91 = scmp.eq.s32.totalorder %s18, 7
    %p92 = por %p90, %p91
    %p93 = scmp.ne.s32.totalorder %s84, %s85
    %p94 = scmp.eq.s32.totalorder %s18, 0
    %p95 = por %p93, %p94
    %p96 = scmp.ne.s32.totalorder %s84, %s85
    %p97 = scmp.eq.s32.totalorder %s19, 7
    %p98 = por %p96, %p97
    %p100 = scmp.ne.s32.totalorder %s85, %s99
    %p101 = scmp.eq.s32.totalorder %s19, 0
    %p102 = por %p100, %p101
    %s104 = sadd.s32 %s103, 1
    %p107 = scmp.eq.s32.totalorder %s13, 7
    %p108 = scmp.ne.s32.totalorder %s103, %s105
    %p109 = scmp.eq.s32.totalorder %s13, 0
    %p110 = por %p108, %p109
    %p111 = scmp.ne.s32.totalorder %s103, %s105
    %p112 = scmp.eq.s32.totalorder %s18, 7
    %p113 = por %p111, %p112
    %p114 = scmp.ne.s32.totalorder %s105, %s106
    %p115 = scmp.eq.s32.totalorder %s18, 0
    %p116 = por %p114, %p115
    %p117 = scmp.ne.s32.totalorder %s105, %s106
    %p118 = scmp.eq.s32.totalorder %s19, 7
    %p119 = por %p117, %p118
    %p121 = scmp.ne.s32.totalorder %s106, %s120
    %p122 = scmp.eq.s32.totalorder %s19, 0
    %p123 = por %p121, %p122
    %s125 = sadd.s32 %s124, 1
    %p128 = scmp.eq.s32.totalorder %s13, 7
    %p129 = scmp.ne.s32.totalorder %s124, %s126
    %p130 = scmp.eq.s32.totalorder %s13, 0
    %p131 = por %p129, %p130
    %p132 = scmp.ne.s32.totalorder %s124, %s126
    %p133 = scmp.eq.s32.totalorder %s18, 7
    %p134 = por %p132, %p133
    %p135 = scmp.ne.s32.totalorder %s126, %s127
    %p136 = scmp.eq.s32.totalorder %s18, 0
    %p137 = por %p135, %p136
    %p138 = scmp.ne.s32.totalorder %s126, %s127
    %p139 = scmp.eq.s32.totalorder %s19, 7
    %p140 = por %p138, %p139
    %p142 = scmp.ne.s32.totalorder %s127, %s141
    %p143 = scmp.eq.s32.totalorder %s19, 0
    %p144 = por %p142, %p143
    %s146 = sadd.s32 %s145, 1
    %p149 = scmp.eq.s32.totalorder %s13, 7
    %p150 = scmp.ne.s32.totalorder %s145, %s147
    %p151 = scmp.eq.s32.totalorder %s13, 0
    %p152 = por %p150, %p151
    %p153 = scmp.ne.s32.totalorder %s145, %s147
    %p154 = scmp.eq.s32.totalorder %s18, 7
    %p155 = por %p153, %p154
    %p156 = scmp.ne.s32.totalorder %s147, %s148
    %p157 = scmp.eq.s32.totalorder %s18, 0
    %p158 = por %p156, %p157
    %p159 = scmp.ne.s32.totalorder %s147, %s148
    %p160 = scmp.eq.s32.totalorder %s19, 7
    %p161 = por %p159, %p160
    %p163 = scmp.ne.s32.totalorder %s148, %s162
    %p164 = scmp.eq.s32.totalorder %s19, 0
    %p165 = por %p163, %p164
    %s167 = sadd.s32 %s166, 1
    %p170 = scmp.eq.s32.totalorder %s13, 7
    %p171 = scmp.ne.s32.totalorder %s166, %s168
    %p172 = scmp.eq.s32.totalorder %s13, 0
    %p173 = por %p171, %p172
    %p174 = scmp.ne.s32.totalorder %s166, %s168
    %p175 = scmp.eq.s32.totalorder %s18, 7
    %p176 = por %p174, %p175
    %p177 = scmp.ne.s32.totalorder %s168, %s169
    %p178 = scmp.eq.s32.totalorder %s18, 0
    %p179 = por %p177, %p178
    %p180 = scmp.ne.s32.totalorder %s168, %s169
    %p181 = scmp.eq.s32.totalorder %s19, 7
    %p182 = por %p180, %p181
    %p184 = scmp.ne.s32.totalorder %s169, %s183
    %p185 = scmp.eq.s32.totalorder %s19, 0
    %p186 = por %p184, %p185
    %s187 = ssub.s32 %s21, %s28
    %s188 = ssub.s32 %s20, %s32
    %s189 = sor.u32 %s187, %s188
    %p190 = scmp.eq.s32.totalorder %s189, 0
    %s192 = sadd.s32 %s191, 1
    %s193 = scalar_select %p190, %s191, %s192
    %p196 = pneg %p190
    %p197 = scmp.eq.s32.totalorder %s13, 7
    %p198 = por %p196, %p197
    %p199 = scmp.ne.s32.totalorder %s191, %s194
    %p200 = scmp.eq.s32.totalorder %s13, 0
    %p201 = por %p199, %p200
    %p202 = scmp.ne.s32.totalorder %s191, %s194
    %p203 = scmp.eq.s32.totalorder %s18, 7
    %p204 = por %p202, %p203
    %p205 = scmp.ne.s32.totalorder %s194, %s195
    %p206 = scmp.eq.s32.totalorder %s18, 0
    %p207 = por %p205, %p206
    %p208 = scmp.ne.s32.totalorder %s194, %s195
    %p209 = scmp.eq.s32.totalorder %s19, 7
    %p210 = por %p208, %p209
    %p212 = scmp.ne.s32.totalorder %s195, %s211
    %p213 = scmp.eq.s32.totalorder %s19, 0
    %p214 = por %p212, %p213
    %p215 = scmp.le.s32.totalorder 1, %s13
    %p216 = scmp.lt.s32.totalorder %s13, 9
    %p217 = pnand %p215, %p216
    %p218 = pneg %p217
    // Predicated region
    $region9: #{model_forward.4} parent=5 // pred_check
      _
    $region10: #{model_forward.4} parent=5 // pred_check_branch
      %220 = sbr.rel (%p217) target = $region12
    $region11: #{model_forward.4} parent=5 // pred_region
      %s221 = ssub.s32 %s13, 1
      // Predicated region
      $region13: #{model_forward.4} parent=11 // pred_check
        %p222 = pneg %p74
      $region14: #{model_forward.4} parent=11 // pred_check_branch
        %224 = sbr.rel (%p222) target = $region16
      $region15: #{model_forward.4} parent=11 // pred_region
        _
      $region16: #{model_forward.4} parent=11 // pred_fallthru
        _
      // Predicated region
      $region17: #{model_forward.4} parent=11 // pred_check
        %p225 = pneg %p95
      $region18: #{model_forward.4} parent=11 // pred_check_branch
        %227 = sbr.rel (%p225) target = $region20
      $region19: #{model_forward.4} parent=11 // pred_region
        _
      $region20: #{model_forward.4} parent=11 // pred_fallthru
        _
      // Predicated region
      $region21: #{model_forward.4} parent=11 // pred_check
        %p228 = pneg %p116
      $region22: #{model_forward.4} parent=11 // pred_check_branch
        %230 = sbr.rel (%p228) target = $region24
      $region23: #{model_forward.4} parent=11 // pred_region
        _
      $region24: #{model_forward.4} parent=11 // pred_fallthru
        _
      // Predicated region
      $region25: #{model_forward.4} parent=11 // pred_check
        %p231 = pneg %p137
      $region26: #{model_forward.4} parent=11 // pred_check_branch
        %233 = sbr.rel (%p231) target = $region28
      $region27: #{model_forward.4} parent=11 // pred_region
        _
      $region28: #{model_forward.4} parent=11 // pred_fallthru
        _
      // Predicated region
      $region29: #{model_forward.4} parent=11 // pred_check
        %p234 = pneg %p158
      $region30: #{model_forward.4} parent=11 // pred_check_branch
        %236 = sbr.rel (%p234) target = $region32
      $region31: #{model_forward.4} parent=11 // pred_region
        _
      $region32: #{model_forward.4} parent=11 // pred_fallthru
        _
      // Predicated region
      $region33: #{model_forward.4} parent=11 // pred_check
        %p237 = pneg %p179
      $region34: #{model_forward.4} parent=11 // pred_check_branch
        %239 = sbr.rel (%p237) target = $region36
      $region35: #{model_forward.4} parent=11 // pred_region
        _
      $region36: #{model_forward.4} parent=11 // pred_fallthru
        _
    $region12: #{model_forward.4} parent=5 // pred_fallthru
      _
    %p240 = scmp.lt.s32.totalorder %s13, 8
    // Predicated region
    $region37: #{model_forward.4} parent=5 // pred_check
      %p241 = pneg %p240
    $region38: #{model_forward.4} parent=5 // pred_check_branch
      %243 = sbr.rel (%p241) target = $region40
    $region39: #{model_forward.4} parent=5 // pred_region
      // Predicated region
      $region41: #{model_forward.4} parent=39 // pred_check
        %p244 = pneg %p47
      $region42: #{model_forward.4} parent=39 // pred_check_branch
        %246 = sbr.rel (%p244) target = $region44
      $region43: #{model_forward.4} parent=39 // pred_region
        %p247 = scmp.lt.s32.totalorder %s21, 7
        %s248 = scalar_select %p247, %s21, 7
        %p249 = scmp.lt.s32.totalorder %s20, 0
        %s250 = scalar_select %p249, %s20, 0
        %s251 = smul.addr %s250, 3
        %s252 = smul.addr %s248, 3
        %s253 = sadd.s32 %s251, %s252
        %s254 = smul.addr %s253, 8
        %s255 = scalar_lea.vmem %s0, %s254
      $region44: #{model_forward.4} parent=39 // pred_fallthru
        _
    $region40: #{model_forward.4} parent=5 // pred_fallthru
      _
    %p256 = scmp.le.s32.totalorder 1, %s13
    %p257 = scmp.lt.s32.totalorder %s13, 9
    %p258 = pnand %p256, %p257
    %p259 = pneg %p258
    // Predicated region
    $region45: #{model_forward.4} parent=5 // pred_check
      _
    $region46: #{model_forward.4} parent=5 // pred_check_branch
      %261 = sbr.rel (%p258) target = $region48
    $region47: #{model_forward.4} parent=5 // pred_region
      %s262 = ssub.s32 %s13, 1
      %p263 = scmp.lt.s32.totalorder %s23, 7
      %s264 = scalar_select %p263, %s23, 7
      %p265 = scmp.lt.s32.totalorder %s22, 0
      %s266 = scalar_select %p265, %s22, 0
      %s267 = smul.addr %s266, 3
      %s268 = smul.addr %s264, 3
      %s269 = sadd.s32 %s267, %s268
      %s270 = smul.addr %s269, 8
      %s271 = scalar_lea.vmem %s0, %s270
      %p272 = pneg %p53
      %p273 = pneg %p50
      %p274 = pneg %p74
      %p275 = pneg %p71
      %p276 = pneg %p95
      %p277 = pneg %p92
      %p278 = pneg %p116
      %p279 = pneg %p113
      %p280 = pneg %p137
      %p281 = pneg %p134
      %p282 = pneg %p158
      %p283 = pneg %p155
      %p284 = pneg %p179
      %p285 = pneg %p176
      %p286 = pneg %p207
      %p287 = pneg %p204
      %p288 = scmp.lt.s32.totalorder %s23, 7
      %s289 = scalar_select %p288, %s23, 7
      %p290 = scmp.lt.s32.totalorder %s22, 0
      %s291 = scalar_select %p290, %s22, 0
      %s292 = sadd.s32 %s291, %s289
      %s293 = smul.addr %s292, 4
      %s294 = scalar_lea.vmem %s7, %s293
      %p295 = scmp.lt.s32.totalorder %s23, 7
      %s296 = scalar_select %p295, %s23, 7
      %p297 = scmp.lt.s32.totalorder %s22, 0
      %s298 = scalar_select %p297, %s22, 0
      %s299 = smul.addr %s298, 3
      %s300 = smul.addr %s296, 3
      %s301 = sadd.s32 %s299, %s300
      %s302 = smul.addr %s301, 8
      %s303 = scalar_lea.vmem %s0, %s302
      %p304 = scmp.lt.s32.totalorder %s23, 7
      %s305 = scalar_select %p304, %s23, 7
      %p306 = scmp.lt.s32.totalorder %s22, 0
      %s307 = scalar_select %p306, %s22, 0
      %s308 = sadd.s32 %s307, %s305
      %s309 = smul.addr %s308, 4
      %s310 = scalar_lea.vmem %s7, %s309
      %p312 = scmp.eq.s32.totalorder %s23, 0
      // Predicated region
      $region49: #{model_forward.4} parent=47 // pred_check
        %p313 = pneg %p312
      $region50: #{model_forward.4} parent=47 // pred_check_branch
        %315 = sbr.rel (%p313) target = $region52
      $region51: #{model_forward.4} parent=47 // pred_region
        %316 = vst [vmem:[#allocation2] sm:$0xff] 0.0
        %317 = vst [vmem:[#allocation3] sm:$0xff] 0.0
      $region52: #{model_forward.4} parent=47 // pred_fallthru
        _
      %v318 = vld [vmem:[#allocation2] sm:$0xff]
      %v319 = vld [vmem:[#allocation3] sm:$0xff]
      %v320 = vld [vmem:[%s303] sm:$0xff]
      %v321 = vld [vmem:[%s303 + $0x8] sm:$0xff]
      %v322 = vld [vmem:[%s303 + $0x10] sm:$0xff]
      %v323 = vpack.c.bf16 %v318, %v318
      %v324 = vld [vmem:[%s1] sm:$0xff]
      %v325 = vld [vmem:[%s1 + $0x8] sm:$0xf]
      %v326 = vld [vmem:[%s1 + $0xc] sm:$0xff]
      %v327 = vld [vmem:[%s1 + $0x14] sm:$0xf]
      %v328 = vld [vmem:[%s1 + $0x18] sm:$0xff]
      %v329 = vld [vmem:[%s1 + $0x20] sm:$0xf]
      %v330 = vld [vmem:[%s1 + $0x24] sm:$0xff]
      %v331 = vld [vmem:[%s1 + $0x2c] sm:$0xf]
      %v332 = vld [vmem:[%s1 + $0x30] sm:$0xff]
      %v333 = vld [vmem:[%s1 + $0x38] sm:$0xf]
      %v334 = vld [vmem:[%s1 + $0x3c] sm:$0xff]
      %v335 = vld [vmem:[%s1 + $0x44] sm:$0xf]
      %v336 = vld [vmem:[%s1 + $0x48] sm:$0xff]
      %v337 = vld [vmem:[%s1 + $0x50] sm:$0xf]
      %v338 = vld [vmem:[%s1 + $0x54] sm:$0xff]
      %v339 = vld [vmem:[%s1 + $0x5c] sm:$0xf]
      %v340 = vld [vmem:[%s1 + $0x60] sm:$0xff]
      %v341 = vld [vmem:[%s1 + $0x68] sm:$0xf]
      %v342 = vld [vmem:[%s1 + $0x6c] sm:$0xff]
      %v343 = vld [vmem:[%s1 + $0x74] sm:$0xf]
      %v344 = vld [vmem:[%s1 + $0x78] sm:$0xff]
      %v345 = vld [vmem:[%s1 + $0x80] sm:$0xf]
      %v346 = vld [vmem:[%s1 + $0x84] sm:$0xff]
      %v347 = vld [vmem:[%s1 + $0x8c] sm:$0xf]
      %v348 = vld [vmem:[%s1 + $0x90] sm:$0xff]
      %v349 = vld [vmem:[%s1 + $0x98] sm:$0xf]
      %v350 = vld [vmem:[%s1 + $0x9c] sm:$0xff]
      %v351 = vld [vmem:[%s1 + $0xa4] sm:$0xf]
      %v352 = vld [vmem:[%s1 + $0xa8] sm:$0xff]
      %v353 = vld [vmem:[%s1 + $0xb0] sm:$0xf]
      %v354 = vld [vmem:[%s1 + $0xb4] sm:$0xff]
      %v355 = vld [vmem:[%s1 + $0xbc] sm:$0xf]
      %v356 = vld [vmem:[%s2] sm:$0x7]
      %v358 = vlaneseq
      %v359 = vshrl.u32 %v358, 7
      %v360 = vsub.s32 0, %v359
      %v361 = vrot.slane %v356, %v360
      %v362 = vlaneseq
      %v363 = vshrl.u32 %v362, 7
      %v364 = vsub.s32 1, %v363
      %v365 = vrot.slane %v356, %v364
      %v366 = vlaneseq
      %v367 = vshrl.u32 %v366, 7
      %v368 = vsub.s32 2, %v367
      %v369 = vrot.slane %v356, %v368
      %v405 = vunpack.c.l.b16 %v324
      %v406 = vunpack.c.h.b16 %v324
      %v407 = vunpack.c.l.b16 %v325
      %v408 = vunpack.c.l.b16 %v326
      %v409 = vunpack.c.h.b16 %v326
      %v410 = vunpack.c.l.b16 %v327
      %v411 = vunpack.c.l.b16 %v328
      %v412 = vunpack.c.h.b16 %v328
      %v413 = vunpack.c.l.b16 %v329
      %v414 = vunpack.c.l.b16 %v330
      %v415 = vunpack.c.h.b16 %v330
      %v416 = vunpack.c.l.b16 %v331
      %v417 = vunpack.c.l.b16 %v332
      %v418 = vunpack.c.h.b16 %v332
      %v419 = vunpack.c.l.b16 %v333
      %v420 = vunpack.c.l.b16 %v334
      %v421 = vunpack.c.h.b16 %v334
      %v422 = vunpack.c.l.b16 %v335
      %v423 = vunpack.c.l.b16 %v336
      %v424 = vunpack.c.h.b16 %v336
      %v425 = vunpack.c.l.b16 %v337
      %v426 = vunpack.c.l.b16 %v338
      %v427 = vunpack.c.h.b16 %v338
      %v428 = vunpack.c.l.b16 %v339
      %v429 = vunpack.c.l.b16 %v340
      %v430 = vunpack.c.h.b16 %v340
      %v431 = vunpack.c.l.b16 %v341
      %v432 = vunpack.c.l.b16 %v342
      %v433 = vunpack.c.h.b16 %v342
      %v434 = vunpack.c.l.b16 %v343
      %v435 = vunpack.c.l.b16 %v344
      %v436 = vunpack.c.h.b16 %v344
      %v437 = vunpack.c.l.b16 %v345
      %v438 = vunpack.c.l.b16 %v346
      %v439 = vunpack.c.h.b16 %v346
      %v440 = vunpack.c.l.b16 %v347
      %v441 = vunpack.c.l.b16 %v348
      %v442 = vunpack.c.h.b16 %v348
      %v443 = vunpack.c.l.b16 %v349
      %v444 = vunpack.c.l.b16 %v350
      %v445 = vunpack.c.h.b16 %v350
      %v446 = vunpack.c.l.b16 %v351
      %v447 = vunpack.c.l.b16 %v352
      %v448 = vunpack.c.h.b16 %v352
      %v449 = vunpack.c.l.b16 %v353
      %v450 = vunpack.c.l.b16 %v354
      %v451 = vunpack.c.h.b16 %v354
      %v452 = vunpack.c.l.b16 %v355
      %v453 = vpack.c.b16 %v408, %v405
      %v454 = vpack.c.b16 %v409, %v406
      %v455 = vpack.c.b16 %v410, %v407
      %v456 = vpack.c.b16 %v414, %v411
      %v457 = vpack.c.b16 %v415, %v412
      %v458 = vpack.c.b16 %v416, %v413
      %v459 = vpack.c.b16 %v420, %v417
      %v460 = vpack.c.b16 %v421, %v418
      %v461 = vpack.c.b16 %v422, %v419
      %v462 = vpack.c.b16 %v426, %v423
      %v463 = vpack.c.b16 %v427, %v424
      %v464 = vpack.c.b16 %v428, %v425
      %v465 = vpack.c.b16 %v432, %v429
      %v466 = vpack.c.b16 %v433, %v430
      %v467 = vpack.c.b16 %v434, %v431
      %v468 = vpack.c.b16 %v438, %v435
      %v469 = vpack.c.b16 %v439, %v436
      %v470 = vpack.c.b16 %v440, %v437
      %v471 = vpack.c.b16 %v444, %v441
      %v472 = vpack.c.b16 %v445, %v442
      %v473 = vpack.c.b16 %v446, %v443
      %v474 = vpack.c.b16 %v450, %v447
      %v475 = vpack.c.b16 %v451, %v448
      %v476 = vpack.c.b16 %v452, %v449
      %501 = vmatprep.subr.bf16.mxu0 %v475
      %502 = vmatpush1.bf16.msra.mxu0 %v474
      %503 = vmatprep.subr.bf16.mxu0 %v472
      %504 = vmatpush1.bf16.msra.mxu0 %v471
      %505 = vmatprep.subr.bf16.mxu0 %v469
      %506 = vmatpush1.bf16.msra.mxu0 %v468
      %507 = vmatprep.subr.bf16.mxu0 %v466
      %508 = vmatpush1.bf16.msra.mxu0 %v465
      %509 = vmatprep.subr.bf16.mxu0 %v463
      %510 = vmatpush1.bf16.msra.mxu0 %v462
      %511 = vmatprep.subr.bf16.mxu0 %v460
      %512 = vmatpush1.bf16.msra.mxu0 %v459
      %513 = vmatprep.subr.bf16.mxu0 %v457
      %514 = vmatpush1.bf16.msra.mxu0 %v456
      %515 = vmatprep.subr.bf16.mxu0 %v454
      %516 = vmatpush1.bf16.msra.mxu0 %v453
      %517 = vmatprep.subr.bf16.mxu0 0
      %518 = vmatpush2.bf16.msra.mxu0 0
      %519 = vmatprep.subr.bf16.mxu0 0
      %520 = vmatpush2.bf16.msra.mxu0 0
      %521 = vmatprep.subr.bf16.mxu0 0
      %522 = vmatpush2.bf16.msra.mxu0 0
      %523 = vmatprep.subr.bf16.mxu0 0
      %524 = vmatpush2.bf16.msra.mxu0 0
      %525 = vmatprep.subr.bf16.mxu0 0
      %526 = vmatpush2.bf16.msra.mxu0 0
      %527 = vmatprep.subr.bf16.mxu0 0
      %528 = vmatpush2.bf16.msra.mxu0 0
      %529 = vmatprep.subr.bf16.mxu0 0
      %530 = vmatpush2.bf16.msra.mxu0 0
      %531 = vmatprep.subr.bf16.mxu0 0
      %532 = vmatpush2.bf16.msra.mxu0 0
      %533 = vmatprep.mubr.bf16.mxu0 0
      %534 = vmatmul.mubr.bf16.gmra.mxu0 %v323
      %v535 = vpop.f32.mrf.mxu0
      %v536 = vadd.f32 %v361, %v535
      %v537 = vpop.f32.mrf.mxu0
      %v538 = vadd.f32 %v365, %v537
      %v539 = vpop.f32.mrf.mxu0
      %v540 = vpop.f32.mrf.mxu0
      %541 = vdwg.mxu0
      %542 = vmatprep.subr.bf16.mxu0 0
      %543 = vmatpush1.bf16.msra.mxu0 %v476
      %544 = vmatprep.subr.bf16.mxu0 0
      %545 = vmatpush1.bf16.msra.mxu0 %v473
      %546 = vmatprep.subr.bf16.mxu0 0
      %547 = vmatpush1.bf16.msra.mxu0 %v470
      %548 = vmatprep.subr.bf16.mxu0 0
      %549 = vmatpush1.bf16.msra.mxu0 %v467
      %550 = vmatprep.subr.bf16.mxu0 0
      %551 = vmatpush1.bf16.msra.mxu0 %v464
      %552 = vmatprep.subr.bf16.mxu0 0
      %553 = vmatpush1.bf16.msra.mxu0 %v461
      %554 = vmatprep.subr.bf16.mxu0 0
      %555 = vmatpush1.bf16.msra.mxu0 %v458
      %556 = vmatprep.subr.bf16.mxu0 0
      %557 = vmatpush1.bf16.msra.mxu0 %v455
      %558 = vmatprep.subr.bf16.mxu0 0
      %559 = vmatpush2.bf16.msra.mxu0 0
      %560 = vmatprep.subr.bf16.mxu0 0
      %561 = vmatpush2.bf16.msra.mxu0 0
      %562 = vmatprep.subr.bf16.mxu0 0
      %563 = vmatpush2.bf16.msra.mxu0 0
      %564 = vmatprep.subr.bf16.mxu0 0
      %565 = vmatpush2.bf16.msra.mxu0 0
      %566 = vmatprep.subr.bf16.mxu0 0
      %567 = vmatpush2.bf16.msra.mxu0 0
      %568 = vmatprep.subr.bf16.mxu0 0
      %569 = vmatpush2.bf16.msra.mxu0 0
      %570 = vmatprep.subr.bf16.mxu0 0
      %571 = vmatpush2.bf16.msra.mxu0 0
      %572 = vmatprep.subr.bf16.mxu0 0
      %573 = vmatpush2.bf16.msra.mxu0 0
      %574 = vmatprep.mubr.bf16.mxu0 0
      %575 = vmatmul.mubr.bf16.gmra.mxu0 %v323
      %v576 = vpop.f32.mrf.mxu0
      %v577 = vadd.f32 %v369, %v576
      %v578 = vpop.f32.mrf.mxu0
      %v579 = vpop.f32.mrf.mxu0
      %v580 = vpop.f32.mrf.mxu0
      %581 = vdwg.mxu0
      %v582 = vpack.c.bf16 %v319, %v319
      %v583 = vld [vmem:[%s5] sm:$0xff]
      %v584 = vld [vmem:[%s5 + $0x8] sm:$0xf]
      %v585 = vld [vmem:[%s5 + $0xc] sm:$0xff]
      %v586 = vld [vmem:[%s5 + $0x14] sm:$0xf]
      %v587 = vld [vmem:[%s5 + $0x18] sm:$0xff]
      %v588 = vld [vmem:[%s5 + $0x20] sm:$0xf]
      %v589 = vld [vmem:[%s5 + $0x24] sm:$0xff]
      %v590 = vld [vmem:[%s5 + $0x2c] sm:$0xf]
      %v591 = vld [vmem:[%s5 + $0x30] sm:$0xff]
      %v592 = vld [vmem:[%s5 + $0x38] sm:$0xf]
      %v593 = vld [vmem:[%s5 + $0x3c] sm:$0xff]
      %v594 = vld [vmem:[%s5 + $0x44] sm:$0xf]
      %v595 = vld [vmem:[%s5 + $0x48] sm:$0xff]
      %v596 = vld [vmem:[%s5 + $0x50] sm:$0xf]
      %v597 = vld [vmem:[%s5 + $0x54] sm:$0xff]
      %v598 = vld [vmem:[%s5 + $0x5c] sm:$0xf]
      %v599 = vld [vmem:[%s5 + $0x60] sm:$0xff]
      %v600 = vld [vmem:[%s5 + $0x68] sm:$0xf]
      %v601 = vld [vmem:[%s5 + $0x6c] sm:$0xff]
      %v602 = vld [vmem:[%s5 + $0x74] sm:$0xf]
      %v603 = vld [vmem:[%s5 + $0x78] sm:$0xff]
      %v604 = vld [vmem:[%s5 + $0x80] sm:$0xf]
      %v605 = vld [vmem:[%s5 + $0x84] sm:$0xff]
      %v606 = vld [vmem:[%s5 + $0x8c] sm:$0xf]
      %v607 = vld [vmem:[%s5 + $0x90] sm:$0xff]
      %v608 = vld [vmem:[%s5 + $0x98] sm:$0xf]
      %v609 = vld [vmem:[%s5 + $0x9c] sm:$0xff]
      %v610 = vld [vmem:[%s5 + $0xa4] sm:$0xf]
      %v611 = vld [vmem:[%s5 + $0xa8] sm:$0xff]
      %v612 = vld [vmem:[%s5 + $0xb0] sm:$0xf]
      %v613 = vld [vmem:[%s5 + $0xb4] sm:$0xff]
      %v614 = vld [vmem:[%s5 + $0xbc] sm:$0xf]
      %v615 = vld [vmem:[%s6] sm:$0x7]
      %v617 = vlaneseq
      %v618 = vshrl.u32 %v617, 7
      %v619 = vsub.s32 0, %v618
      %v620 = vrot.slane %v615, %v619
      %v621 = vlaneseq
      %v622 = vshrl.u32 %v621, 7
      %v623 = vsub.s32 1, %v622
      %v624 = vrot.slane %v615, %v623
      %v625 = vlaneseq
      %v626 = vshrl.u32 %v625, 7
      %v627 = vsub.s32 2, %v626
      %v628 = vrot.slane %v615, %v627
      %v664 = vunpack.c.l.b16 %v583
      %v665 = vunpack.c.h.b16 %v583
      %v666 = vunpack.c.l.b16 %v584
      %v667 = vunpack.c.l.b16 %v585
      %v668 = vunpack.c.h.b16 %v585
      %v669 = vunpack.c.l.b16 %v586
      %v670 = vunpack.c.l.b16 %v587
      %v671 = vunpack.c.h.b16 %v587
      %v672 = vunpack.c.l.b16 %v588
      %v673 = vunpack.c.l.b16 %v589
      %v674 = vunpack.c.h.b16 %v589
      %v675 = vunpack.c.l.b16 %v590
      %v676 = vunpack.c.l.b16 %v591
      %v677 = vunpack.c.h.b16 %v591
      %v678 = vunpack.c.l.b16 %v592
      %v679 = vunpack.c.l.b16 %v593
      %v680 = vunpack.c.h.b16 %v593
      %v681 = vunpack.c.l.b16 %v594
      %v682 = vunpack.c.l.b16 %v595
      %v683 = vunpack.c.h.b16 %v595
      %v684 = vunpack.c.l.b16 %v596
      %v685 = vunpack.c.l.b16 %v597
      %v686 = vunpack.c.h.b16 %v597
      %v687 = vunpack.c.l.b16 %v598
      %v688 = vunpack.c.l.b16 %v599
      %v689 = vunpack.c.h.b16 %v599
      %v690 = vunpack.c.l.b16 %v600
      %v691 = vunpack.c.l.b16 %v601
      %v692 = vunpack.c.h.b16 %v601
      %v693 = vunpack.c.l.b16 %v602
      %v694 = vunpack.c.l.b16 %v603
      %v695 = vunpack.c.h.b16 %v603
      %v696 = vunpack.c.l.b16 %v604
      %v697 = vunpack.c.l.b16 %v605
      %v698 = vunpack.c.h.b16 %v605
      %v699 = vunpack.c.l.b16 %v606
      %v700 = vunpack.c.l.b16 %v607
      %v701 = vunpack.c.h.b16 %v607
      %v702 = vunpack.c.l.b16 %v608
      %v703 = vunpack.c.l.b16 %v609
      %v704 = vunpack.c.h.b16 %v609
      %v705 = vunpack.c.l.b16 %v610
      %v706 = vunpack.c.l.b16 %v611
      %v707 = vunpack.c.h.b16 %v611
      %v708 = vunpack.c.l.b16 %v612
      %v709 = vunpack.c.l.b16 %v613
      %v710 = vunpack.c.h.b16 %v613
      %v711 = vunpack.c.l.b16 %v614
      %v712 = vpack.c.b16 %v667, %v664
      %v713 = vpack.c.b16 %v668, %v665
      %v714 = vpack.c.b16 %v669, %v666
      %v715 = vpack.c.b16 %v673, %v670
      %v716 = vpack.c.b16 %v674, %v671
      %v717 = vpack.c.b16 %v675, %v672
      %v718 = vpack.c.b16 %v679, %v676
      %v719 = vpack.c.b16 %v680, %v677
      %v720 = vpack.c.b16 %v681, %v678
      %v721 = vpack.c.b16 %v685, %v682
      %v722 = vpack.c.b16 %v686, %v683
      %v723 = vpack.c.b16 %v687, %v684
      %v724 = vpack.c.b16 %v691, %v688
      %v725 = vpack.c.b16 %v692, %v689
      %v726 = vpack.c.b16 %v693, %v690
      %v727 = vpack.c.b16 %v697, %v694
      %v728 = vpack.c.b16 %v698, %v695
      %v729 = vpack.c.b16 %v699, %v696
      %v730 = vpack.c.b16 %v703, %v700
      %v731 = vpack.c.b16 %v704, %v701
      %v732 = vpack.c.b16 %v705, %v702
      %v733 = vpack.c.b16 %v709, %v706
      %v734 = vpack.c.b16 %v710, %v707
      %v735 = vpack.c.b16 %v711, %v708
      %760 = vmatprep.subr.bf16.mxu0 %v734
      %761 = vmatpush1.bf16.msra.mxu0 %v733
      %762 = vmatprep.subr.bf16.mxu0 %v731
      %763 = vmatpush1.bf16.msra.mxu0 %v730
      %764 = vmatprep.subr.bf16.mxu0 %v728
      %765 = vmatpush1.bf16.msra.mxu0 %v727
      %766 = vmatprep.subr.bf16.mxu0 %v725
      %767 = vmatpush1.bf16.msra.mxu0 %v724
      %768 = vmatprep.subr.bf16.mxu0 %v722
      %769 = vmatpush1.bf16.msra.mxu0 %v721
      %770 = vmatprep.subr.bf16.mxu0 %v719
      %771 = vmatpush1.bf16.msra.mxu0 %v718
      %772 = vmatprep.subr.bf16.mxu0 %v716
      %773 = vmatpush1.bf16.msra.mxu0 %v715
      %774 = vmatprep.subr.bf16.mxu0 %v713
      %775 = vmatpush1.bf16.msra.mxu0 %v712
      %776 = vmatprep.subr.bf16.mxu0 0
      %777 = vmatpush2.bf16.msra.mxu0 0
      %778 = vmatprep.subr.bf16.mxu0 0
      %779 = vmatpush2.bf16.msra.mxu0 0
      %780 = vmatprep.subr.bf16.mxu0 0
      %781 = vmatpush2.bf16.msra.mxu0 0
      %782 = vmatprep.subr.bf16.mxu0 0
      %783 = vmatpush2.bf16.msra.mxu0 0
      %784 = vmatprep.subr.bf16.mxu0 0
      %785 = vmatpush2.bf16.msra.mxu0 0
      %786 = vmatprep.subr.bf16.mxu0 0
      %787 = vmatpush2.bf16.msra.mxu0 0
      %788 = vmatprep.subr.bf16.mxu0 0
      %789 = vmatpush2.bf16.msra.mxu0 0
      %790 = vmatprep.subr.bf16.mxu0 0
      %791 = vmatpush2.bf16.msra.mxu0 0
      %792 = vmatprep.mubr.bf16.mxu0 0
      %793 = vmatmul.mubr.bf16.gmra.mxu0 %v582
      %v794 = vpop.f32.mrf.mxu0
      %v795 = vadd.f32 %v620, %v794
      %v796 = vpop.f32.mrf.mxu0
      %v797 = vadd.f32 %v624, %v796
      %v798 = vpop.f32.mrf.mxu0
      %v799 = vpop.f32.mrf.mxu0
      %800 = vdwg.mxu0
      %801 = vmatprep.subr.bf16.mxu0 0
      %802 = vmatpush1.bf16.msra.mxu0 %v735
      %803 = vmatprep.subr.bf16.mxu0 0
      %804 = vmatpush1.bf16.msra.mxu0 %v732
      %805 = vmatprep.subr.bf16.mxu0 0
      %806 = vmatpush1.bf16.msra.mxu0 %v729
      %807 = vmatprep.subr.bf16.mxu0 0
      %808 = vmatpush1.bf16.msra.mxu0 %v726
      %809 = vmatprep.subr.bf16.mxu0 0
      %810 = vmatpush1.bf16.msra.mxu0 %v723
      %811 = vmatprep.subr.bf16.mxu0 0
      %812 = vmatpush1.bf16.msra.mxu0 %v720
      %813 = vmatprep.subr.bf16.mxu0 0
      %814 = vmatpush1.bf16.msra.mxu0 %v717
      %815 = vmatprep.subr.bf16.mxu0 0
      %816 = vmatpush1.bf16.msra.mxu0 %v714
      %817 = vmatprep.subr.bf16.mxu0 0
      %818 = vmatpush2.bf16.msra.mxu0 0
      %819 = vmatprep.subr.bf16.mxu0 0
      %820 = vmatpush2.bf16.msra.mxu0 0
      %821 = vmatprep.subr.bf16.mxu0 0
      %822 = vmatpush2.bf16.msra.mxu0 0
      %823 = vmatprep.subr.bf16.mxu0 0
      %824 = vmatpush2.bf16.msra.mxu0 0
      %825 = vmatprep.subr.bf16.mxu0 0
      %826 = vmatpush2.bf16.msra.mxu0 0
      %827 = vmatprep.subr.bf16.mxu0 0
      %828 = vmatpush2.bf16.msra.mxu0 0
      %829 = vmatprep.subr.bf16.mxu0 0
      %830 = vmatpush2.bf16.msra.mxu0 0
      %831 = vmatprep.subr.bf16.mxu0 0
      %832 = vmatpush2.bf16.msra.mxu0 0
      %833 = vmatprep.mubr.bf16.mxu0 0
      %834 = vmatmul.mubr.bf16.gmra.mxu0 %v582
      %v835 = vpop.f32.mrf.mxu0
      %v836 = vadd.f32 %v628, %v835
      %v837 = vpop.f32.mrf.mxu0
      %v838 = vpop.f32.mrf.mxu0
      %v839 = vpop.f32.mrf.mxu0
      %840 = vdwg.mxu0
      %v841 = vadd.f32 %v320, %v536
      %v842 = vxor.u32 %v841, 2147483648
      %v843 = vmul.f32 %v842, 1.442695
      %v844 = vpow.pop %v843
      %v845 = vadd.f32 %v844, 1.0
      %v846 = vrcp.pop %v845
      %v847 = vmul.f32 1.0, %v846
      %v848 = vadd.f32 %v321, %v538
      %v849 = vxor.u32 %v848, 2147483648
      %v850 = vmul.f32 %v849, 1.442695
      %v851 = vpow.pop %v850
      %v852 = vadd.f32 %v851, 1.0
      %v853 = vrcp.pop %v852
      %v854 = vmul.f32 1.0, %v853
      %v855 = vmul.f32 %v847, %v577
      %v856 = vadd.f32 %v322, %v855
      %v857 = vtanh.pop %v856
      %v858 = vsub.f32 1.0, %v854
      %v859 = vmul.f32 %v858, %v857
      %v860 = vmul.f32 %v854, %v318
      %v861 = vadd.f32 %v859, %v860
      %v862 = vpack.c.bf16 %v861, %v861
      %v863 = vld [vmem:[%s3] sm:$0xff]
      %v864 = vld [vmem:[%s3 + $0x8] sm:$0xf]
      %v865 = vld [vmem:[%s3 + $0xc] sm:$0xff]
      %v866 = vld [vmem:[%s3 + $0x14] sm:$0xf]
      %v867 = vld [vmem:[%s3 + $0x18] sm:$0xff]
      %v868 = vld [vmem:[%s3 + $0x20] sm:$0xf]
      %v869 = vld [vmem:[%s3 + $0x24] sm:$0xff]
      %v870 = vld [vmem:[%s3 + $0x2c] sm:$0xf]
      %v871 = vld [vmem:[%s3 + $0x30] sm:$0xff]
      %v872 = vld [vmem:[%s3 + $0x38] sm:$0xf]
      %v873 = vld [vmem:[%s3 + $0x3c] sm:$0xff]
      %v874 = vld [vmem:[%s3 + $0x44] sm:$0xf]
      %v875 = vld [vmem:[%s3 + $0x48] sm:$0xff]
      %v876 = vld [vmem:[%s3 + $0x50] sm:$0xf]
      %v877 = vld [vmem:[%s3 + $0x54] sm:$0xff]
      %v878 = vld [vmem:[%s3 + $0x5c] sm:$0xf]
      %v879 = vld [vmem:[%s3 + $0x60] sm:$0xff]
      %v880 = vld [vmem:[%s3 + $0x68] sm:$0xf]
      %v881 = vld [vmem:[%s3 + $0x6c] sm:$0xff]
      %v882 = vld [vmem:[%s3 + $0x74] sm:$0xf]
      %v883 = vld [vmem:[%s3 + $0x78] sm:$0xff]
      %v884 = vld [vmem:[%s3 + $0x80] sm:$0xf]
      %v885 = vld [vmem:[%s3 + $0x84] sm:$0xff]
      %v886 = vld [vmem:[%s3 + $0x8c] sm:$0xf]
      %v887 = vld [vmem:[%s3 + $0x90] sm:$0xff]
      %v888 = vld [vmem:[%s3 + $0x98] sm:$0xf]
      %v889 = vld [vmem:[%s3 + $0x9c] sm:$0xff]
      %v890 = vld [vmem:[%s3 + $0xa4] sm:$0xf]
      %v891 = vld [vmem:[%s3 + $0xa8] sm:$0xff]
      %v892 = vld [vmem:[%s3 + $0xb0] sm:$0xf]
      %v893 = vld [vmem:[%s3 + $0xb4] sm:$0xff]
      %v894 = vld [vmem:[%s3 + $0xbc] sm:$0xf]
      %v895 = vld [vmem:[%s4] sm:$0x7]
      %v897 = vlaneseq
      %v898 = vshrl.u32 %v897, 7
      %v899 = vsub.s32 0, %v898
      %v900 = vrot.slane %v895, %v899
      %v901 = vlaneseq
      %v902 = vshrl.u32 %v901, 7
      %v903 = vsub.s32 1, %v902
      %v904 = vrot.slane %v895, %v903
      %v905 = vlaneseq
      %v906 = vshrl.u32 %v905, 7
      %v907 = vsub.s32 2, %v906
      %v908 = vrot.slane %v895, %v907
      %v944 = vunpack.c.l.b16 %v863
      %v945 = vunpack.c.h.b16 %v863
      %v946 = vunpack.c.l.b16 %v864
      %v947 = vunpack.c.l.b16 %v865
      %v948 = vunpack.c.h.b16 %v865
      %v949 = vunpack.c.l.b16 %v866
      %v950 = vunpack.c.l.b16 %v867
      %v951 = vunpack.c.h.b16 %v867
      %v952 = vunpack.c.l.b16 %v868
      %v953 = vunpack.c.l.b16 %v869
      %v954 = vunpack.c.h.b16 %v869
      %v955 = vunpack.c.l.b16 %v870
      %v956 = vunpack.c.l.b16 %v871
      %v957 = vunpack.c.h.b16 %v871
      %v958 = vunpack.c.l.b16 %v872
      %v959 = vunpack.c.l.b16 %v873
      %v960 = vunpack.c.h.b16 %v873
      %v961 = vunpack.c.l.b16 %v874
      %v962 = vunpack.c.l.b16 %v875
      %v963 = vunpack.c.h.b16 %v875
      %v964 = vunpack.c.l.b16 %v876
      %v965 = vunpack.c.l.b16 %v877
      %v966 = vunpack.c.h.b16 %v877
      %v967 = vunpack.c.l.b16 %v878
      %v968 = vunpack.c.l.b16 %v879
      %v969 = vunpack.c.h.b16 %v879
      %v970 = vunpack.c.l.b16 %v880
      %v971 = vunpack.c.l.b16 %v881
      %v972 = vunpack.c.h.b16 %v881
      %v973 = vunpack.c.l.b16 %v882
      %v974 = vunpack.c.l.b16 %v883
      %v975 = vunpack.c.h.b16 %v883
      %v976 = vunpack.c.l.b16 %v884
      %v977 = vunpack.c.l.b16 %v885
      %v978 = vunpack.c.h.b16 %v885
      %v979 = vunpack.c.l.b16 %v886
      %v980 = vunpack.c.l.b16 %v887
      %v981 = vunpack.c.h.b16 %v887
      %v982 = vunpack.c.l.b16 %v888
      %v983 = vunpack.c.l.b16 %v889
      %v984 = vunpack.c.h.b16 %v889
      %v985 = vunpack.c.l.b16 %v890
      %v986 = vunpack.c.l.b16 %v891
      %v987 = vunpack.c.h.b16 %v891
      %v988 = vunpack.c.l.b16 %v892
      %v989 = vunpack.c.l.b16 %v893
      %v990 = vunpack.c.h.b16 %v893
      %v991 = vunpack.c.l.b16 %v894
      %v992 = vpack.c.b16 %v947, %v944
      %v993 = vpack.c.b16 %v948, %v945
      %v994 = vpack.c.b16 %v949, %v946
      %v995 = vpack.c.b16 %v953, %v950
      %v996 = vpack.c.b16 %v954, %v951
      %v997 = vpack.c.b16 %v955, %v952
      %v998 = vpack.c.b16 %v959, %v956
      %v999 = vpack.c.b16 %v960, %v957
      %v1000 = vpack.c.b16 %v961, %v958
      %v1001 = vpack.c.b16 %v965, %v962
      %v1002 = vpack.c.b16 %v966, %v963
      %v1003 = vpack.c.b16 %v967, %v964
      %v1004 = vpack.c.b16 %v971, %v968
      %v1005 = vpack.c.b16 %v972, %v969
      %v1006 = vpack.c.b16 %v973, %v970
      %v1007 = vpack.c.b16 %v977, %v974
      %v1008 = vpack.c.b16 %v978, %v975
      %v1009 = vpack.c.b16 %v979, %v976
      %v1010 = vpack.c.b16 %v983, %v980
      %v1011 = vpack.c.b16 %v984, %v981
      %v1012 = vpack.c.b16 %v985, %v982
      %v1013 = vpack.c.b16 %v989, %v986
      %v1014 = vpack.c.b16 %v990, %v987
      %v1015 = vpack.c.b16 %v991, %v988
      %1040 = vmatprep.subr.bf16.mxu0 %v1014
      %1041 = vmatpush1.bf16.msra.mxu0 %v1013
      %1042 = vmatprep.subr.bf16.mxu0 %v1011
      %1043 = vmatpush1.bf16.msra.mxu0 %v1010
      %1044 = vmatprep.subr.bf16.mxu0 %v1008
      %1045 = vmatpush1.bf16.msra.mxu0 %v1007
      %1046 = vmatprep.subr.bf16.mxu0 %v1005
      %1047 = vmatpush1.bf16.msra.mxu0 %v1004
      %1048 = vmatprep.subr.bf16.mxu0 %v1002
      %1049 = vmatpush1.bf16.msra.mxu0 %v1001
      %1050 = vmatprep.subr.bf16.mxu0 %v999
      %1051 = vmatpush1.bf16.msra.mxu0 %v998
      %1052 = vmatprep.subr.bf16.mxu0 %v996
      %1053 = vmatpush1.bf16.msra.mxu0 %v995
      %1054 = vmatprep.subr.bf16.mxu0 %v993
      %1055 = vmatpush1.bf16.msra.mxu0 %v992
      %1056 = vmatprep.subr.bf16.mxu0 0
      %1057 = vmatpush2.bf16.msra.mxu0 0
      %1058 = vmatprep.subr.bf16.mxu0 0
      %1059 = vmatpush2.bf16.msra.mxu0 0
      %1060 = vmatprep.subr.bf16.mxu0 0
      %1061 = vmatpush2.bf16.msra.mxu0 0
      %1062 = vmatprep.subr.bf16.mxu0 0
      %1063 = vmatpush2.bf16.msra.mxu0 0
      %1064 = vmatprep.subr.bf16.mxu0 0
      %1065 = vmatpush2.bf16.msra.mxu0 0
      %1066 = vmatprep.subr.bf16.mxu0 0
      %1067 = vmatpush2.bf16.msra.mxu0 0
      %1068 = vmatprep.subr.bf16.mxu0 0
      %1069 = vmatpush2.bf16.msra.mxu0 0
      %1070 = vmatprep.subr.bf16.mxu0 0
      %1071 = vmatpush2.bf16.msra.mxu0 0
      %1072 = vmatprep.mubr.bf16.mxu0 0
      %1073 = vmatmul.mubr.bf16.gmra.mxu0 %v862
      %v1074 = vpop.f32.mrf.mxu0
      %v1075 = vadd.f32 %v900, %v1074
      %v1076 = vpop.f32.mrf.mxu0
      %v1077 = vadd.f32 %v904, %v1076
      %v1078 = vpop.f32.mrf.mxu0
      %v1079 = vpop.f32.mrf.mxu0
      %1080 = vdwg.mxu0
      %1081 = vmatprep.subr.bf16.mxu0 0
      %1082 = vmatpush1.bf16.msra.mxu0 %v1015
      %1083 = vmatprep.subr.bf16.mxu0 0
      %1084 = vmatpush1.bf16.msra.mxu0 %v1012
      %1085 = vmatprep.subr.bf16.mxu0 0
      %1086 = vmatpush1.bf16.msra.mxu0 %v1009
      %1087 = vmatprep.subr.bf16.mxu0 0
      %1088 = vmatpush1.bf16.msra.mxu0 %v1006
      %1089 = vmatprep.subr.bf16.mxu0 0
      %1090 = vmatpush1.bf16.msra.mxu0 %v1003
      %1091 = vmatprep.subr.bf16.mxu0 0
      %1092 = vmatpush1.bf16.msra.mxu0 %v1000
      %1093 = vmatprep.subr.bf16.mxu0 0
      %1094 = vmatpush1.bf16.msra.mxu0 %v997
      %1095 = vmatprep.subr.bf16.mxu0 0
      %1096 = vmatpush1.bf16.msra.mxu0 %v994
      %1097 = vmatprep.subr.bf16.mxu0 0
      %1098 = vmatpush2.bf16.msra.mxu0 0
      %1099 = vmatprep.subr.bf16.mxu0 0
      %1100 = vmatpush2.bf16.msra.mxu0 0
      %1101 = vmatprep.subr.bf16.mxu0 0
      %1102 = vmatpush2.bf16.msra.mxu0 0
      %1103 = vmatprep.subr.bf16.mxu0 0
      %1104 = vmatpush2.bf16.msra.mxu0 0
      %1105 = vmatprep.subr.bf16.mxu0 0
      %1106 = vmatpush2.bf16.msra.mxu0 0
      %1107 = vmatprep.subr.bf16.mxu0 0
      %1108 = vmatpush2.bf16.msra.mxu0 0
      %1109 = vmatprep.subr.bf16.mxu0 0
      %1110 = vmatpush2.bf16.msra.mxu0 0
      %1111 = vmatprep.subr.bf16.mxu0 0
      %1112 = vmatpush2.bf16.msra.mxu0 0
      %1113 = vmatprep.mubr.bf16.mxu0 0
      %1114 = vmatmul.mubr.bf16.gmra.mxu0 %v862
      %v1115 = vpop.f32.mrf.mxu0
      %v1116 = vadd.f32 %v908, %v1115
      %v1117 = vpop.f32.mrf.mxu0
      %v1118 = vpop.f32.mrf.mxu0
      %v1119 = vpop.f32.mrf.mxu0
      %1120 = vdwg.mxu0
      %v1121 = vadd.f32 %v1075, %v795
      %v1122 = vxor.u32 %v1121, 2147483648
      %v1123 = vmul.f32 %v1122, 1.442695
      %v1124 = vpow.pop %v1123
      %v1125 = vadd.f32 %v1124, 1.0
      %v1126 = vrcp.pop %v1125
      %v1127 = vmul.f32 1.0, %v1126
      %v1128 = vadd.f32 %v1077, %v797
      %v1129 = vxor.u32 %v1128, 2147483648
      %v1130 = vmul.f32 %v1129, 1.442695
      %v1131 = vpow.pop %v1130
      %v1132 = vadd.f32 %v1131, 1.0
      %v1133 = vrcp.pop %v1132
      %v1134 = vmul.f32 1.0, %v1133
      %v1135 = vmul.f32 %v1127, %v836
      %v1136 = vadd.f32 %v1116, %v1135
      %v1137 = vtanh.pop %v1136
      %v1138 = vsub.f32 1.0, %v1134
      %v1139 = vmul.f32 %v1138, %v1137
      %v1140 = vmul.f32 %v1134, %v319
      %v1141 = vadd.f32 %v1139, %v1140
      %1142 = vst [vmem:[#allocation2] sm:$0xff] %v861
      %1143 = vst [vmem:[#allocation3] sm:$0xff] %v1141
      %v1144 = vpack.c.bf16 %v1141, %v1141
      %1145 = vst [vmem:[%s310] sm:$0xf] %v1144
      %p1146 = scmp.lt.s32.totalorder %s23, 7
      %s1147 = scalar_select %p1146, %s23, 7
      %p1148 = scmp.lt.s32.totalorder %s22, 0
      %s1149 = scalar_select %p1148, %s22, 0
      %s1150 = sadd.s32 %s1149, %s1147
      %s1151 = smul.addr %s1150, 4
      %s1152 = scalar_lea.vmem %s7, %s1151
      // Predicated region
      $region53: #{model_forward.4} parent=47 // pred_check
        %p1153 = pneg %p204
      $region54: #{model_forward.4} parent=47 // pred_check_branch
        %1155 = sbr.rel (%p1153) target = $region56
      $region55: #{model_forward.4} parent=47 // pred_region
        _
      $region56: #{model_forward.4} parent=47 // pred_fallthru
        _
    $region48: #{model_forward.4} parent=5 // pred_fallthru
      _
    %p1156 = scmp.le.s32.totalorder 2, %s13
    // Predicated region
    $region57: #{model_forward.4} parent=5 // pred_check
      %p1157 = pneg %p1156
    $region58: #{model_forward.4} parent=5 // pred_check_branch
      %1159 = sbr.rel (%p1157) target = $region60
    $region59: #{model_forward.4} parent=5 // pred_region
      %s1160 = ssub.s32 %s13, 2
      // Predicated region
      $region61: #{model_forward.4} parent=59 // pred_check
        %p1161 = pneg %p210
      $region62: #{model_forward.4} parent=59 // pred_check_branch
        %1163 = sbr.rel (%p1161) target = $region64
      $region63: #{model_forward.4} parent=59 // pred_region
        %p1164 = scmp.lt.s32.totalorder %s25, 7
        %s1165 = scalar_select %p1164, %s25, 7
        %p1166 = scmp.lt.s32.totalorder %s24, 0
        %s1167 = scalar_select %p1166, %s24, 0
        %s1168 = sadd.s32 %s1167, %s1165
        %s1169 = smul.addr %s1168, 4
        %s1170 = scalar_lea.vmem %s7, %s1169
      $region64: #{model_forward.4} parent=59 // pred_fallthru
        _
    $region60: #{model_forward.4} parent=5 // pred_fallthru
      _
  $region6: #{model_forward.4} parent=0 // loop_footer
    %s17 = sadd.s32 1, %s13
  $region7: #{model_forward.4} parent=0 // loop_footer_branch
    %12 = sbr.rel target = $region3
  $region8: #{model_forward.4} parent=0 // loop_exit
    _

</llo_original>
